<compile_context>
chip_gen: v6e
topology: v6e:2x2x1
jax: 0.10.0
libtpu: 0.0.40
codegen_flags: <defaults>
</compile_context>

<pallas_src>
import math
import functools

import jax
import jax.numpy as jnp
from jax import lax
from jax.experimental import pallas as pl
from jax.experimental.pallas import tpu as pltpu


def _mhca_kernel(q_ref, k_ref, v_ref,
                 wqT_ref, wkT_ref, wvT_ref, woT_ref,
                 bq_ref, bk_ref, bv_ref, bo_ref,
                 *out_refs,
                 num_heads, d_k, scale, with_attn):
    out_ref = out_refs[0]
    attn_ref = out_refs[1] if with_attn else None

    # Current (batch, q-tile) inputs, cast to bf16 for the MXU.
    q = q_ref[0].astype(jnp.bfloat16)   # (Bq, D)
    k = k_ref[0].astype(jnp.bfloat16)   # (Sk, D)
    v = v_ref[0].astype(jnp.bfloat16)   # (Sk, D)

    # Full-width projections (one wide MXU pass each), f32 accumulation + f32 bias.
    # NOTE: K/V projections are recomputed per q-tile (not cached across the q-tile
    # axis) so the kernel stays correct when the parallel axes are sharded across
    # TensorCores; with a single q-tile this costs nothing.
    Qp = jnp.dot(q, wqT_ref[...], preferred_element_type=jnp.float32) + bq_ref[...]  # (Bq, D)
    Kp = jnp.dot(k, wkT_ref[...], preferred_element_type=jnp.float32) + bk_ref[...]  # (Sk, D)
    Vp = jnp.dot(v, wvT_ref[...], preferred_element_type=jnp.float32) + bv_ref[...]  # (Sk, D)

    # Static unrolled head loop: all slices below are compile-time constants.
    ctx_parts = []
    for h in range(num_heads):
        lo = h * d_k
        Qh = Qp[:, lo:lo + d_k].astype(jnp.bfloat16)   # (Bq, d_k)
        Kh = Kp[:, lo:lo + d_k].astype(jnp.bfloat16)   # (Sk, d_k)
        Vh = Vp[:, lo:lo + d_k].astype(jnp.bfloat16)   # (Sk, d_k)

        # scores = Qh @ Kh^T without materializing a transpose (contract last dims).
        scores = lax.dot_general(
            Qh, Kh, (((1,), (1,)), ((), ())),
            preferred_element_type=jnp.float32) * scale              # (Bq, Sk) f32
        scores = scores - jnp.max(scores, axis=-1, keepdims=True)
        e = jnp.exp(scores)
        denom = jnp.sum(e, axis=-1, keepdims=True)
        attn = e * pl.reciprocal(denom, approx=True)                  # (Bq, Sk) f32

        if with_attn:
            attn_ref[0, h] = attn  # post-softmax weights (dropout = identity in eval)

        ctx_parts.append(jnp.dot(attn.astype(jnp.bfloat16), Vh,
                                 preferred_element_type=jnp.float32))  # (Bq, d_k)

    # Merge heads and do one full-width output projection; fold in the bias and
    # store the (lane-dense) output block exactly once.
    ctx = jnp.concatenate(ctx_parts, axis=-1)                          # (Bq, D) f32
    out = jnp.dot(ctx.astype(jnp.bfloat16), woT_ref[...],
                  preferred_element_type=jnp.float32) + bo_ref[...]    # (Bq, D)
    out_ref[0] = out
    # TODO(synk): attention_dropout / output_dropout omitted (eval-mode identity);
    # optional `mask` argument (None in this forward path) not implemented.


def multihead_cross_attention(query, key, value, params, num_heads,
                              *, return_attention=True, block_q=None):
    B, Sq, D = query.shape
    _, Sk, _ = key.shape
    assert D % num_heads == 0
    d_k = D // num_heads

    # q-tile size: as large as comfortably fits VMEM (tune 256-512 for v7x's 64 MiB,
    # 512-1024 for v5e/v6e's 128 MiB). Toy shapes use a single full tile.
    if block_q is None:
        block_q = Sq if Sq <= 512 else 512
    if Sq % block_q != 0:
        block_q = Sq  # TODO(synk): ragged Sq tiling not handled; fall back to one tile.
    nq = Sq // block_q

    # PyTorch (out,in) -> (in,out) transpose on the host + bf16 for the MXU.
    def prep_w(w):
        return jnp.asarray(w).T.astype(jnp.bfloat16)

    WqT, WkT = prep_w(params["Wq"]), prep_w(params["Wk"])
    WvT, WoT = prep_w(params["Wv"]), prep_w(params["Wo"])
    bq = params["bq"].reshape(1, D).astype(jnp.float32)
    bk = params["bk"].reshape(1, D).astype(jnp.float32)
    bv = params["bv"].reshape(1, D).astype(jnp.float32)
    bo = params["bo"].reshape(1, D).astype(jnp.float32)

    kernel = functools.partial(_mhca_kernel, num_heads=num_heads, d_k=d_k,
                               scale=1.0 / math.sqrt(d_k),
                               with_attn=return_attention)

    grid = (B, nq)
    const = lambda b, qi: (0, 0)  # grid-invariant: weights/biases stay VMEM-resident

    in_specs = [
        pl.BlockSpec((1, block_q, D), lambda b, qi: (b, qi, 0)),   # query tile
        pl.BlockSpec((1, Sk, D),      lambda b, qi: (b, 0, 0)),    # key   (resident per batch)
        pl.BlockSpec((1, Sk, D),      lambda b, qi: (b, 0, 0)),    # value (resident per batch)
        pl.BlockSpec((D, D), const),                               # Wq^T (full, resident)
        pl.BlockSpec((D, D), const),                               # Wk^T
        pl.BlockSpec((D, D), const),                               # Wv^T
        pl.BlockSpec((D, D), const),                               # Wo^T
        pl.BlockSpec((1, D), const),                               # bq
        pl.BlockSpec((1, D), const),                               # bk
        pl.BlockSpec((1, D), const),                               # bv
        pl.BlockSpec((1, D), const),                               # bo
    ]

    out_spec_o = pl.BlockSpec((1, block_q, D), lambda b, qi: (b, qi, 0))
    shape_o = jax.ShapeDtypeStruct((B, Sq, D), jnp.float32)
    if return_attention:
        out_shape = (shape_o,
                     jax.ShapeDtypeStruct((B, num_heads, Sq, Sk), jnp.float32))
        out_specs = (out_spec_o,
                     pl.BlockSpec((1, num_heads, block_q, Sk),
                                  lambda b, qi: (b, 0, qi, 0)))
    else:
        out_shape = shape_o
        out_specs = out_spec_o

    result = pl.pallas_call(
        kernel,
        grid=grid,
        in_specs=in_specs,
        out_specs=out_specs,
        out_shape=out_shape,
        compiler_params=pltpu.CompilerParams(
            dimension_semantics=("parallel", "parallel"),
            vmem_limit_bytes=48 * 1024 * 1024),
    )(query, key, value, WqT, WkT, WvT, WoT, bq, bk, bv, bo)

    if return_attention:
        out, attn = result
        return out, attn
    return result, None


def _reference(query, key, value, params, num_heads):
    B, Sq, D = query.shape
    _, Sk, _ = key.shape
    d_k = D // num_heads

    def lin(x, W, b):
        return x @ W.T + b

    Q = lin(query, params["Wq"], params["bq"]).reshape(B, Sq, num_heads, d_k).transpose(0, 2, 1, 3)
    K = lin(key,   params["Wk"], params["bk"]).reshape(B, Sk, num_heads, d_k).transpose(0, 2, 1, 3)
    V = lin(value, params["Wv"], params["bv"]).reshape(B, Sk, num_heads, d_k).transpose(0, 2, 1, 3)
    scores = jnp.einsum("bhqd,bhkd->bhqk", Q, K) / math.sqrt(d_k)
    attn = jax.nn.softmax(scores, axis=-1)
    ctx = jnp.einsum("bhqk,bhkd->bhqd", attn, V)
    ctx = ctx.transpose(0, 2, 1, 3).reshape(B, Sq, D)
    out = lin(ctx, params["Wo"], params["bo"])
    return out, attn


if __name__ == "__main__":
    # Small shapes consistent with the module's forward.
    B, Sq, Sk = 2, 8, 16
    d_model, num_heads = 32, 4

    key0 = jax.random.PRNGKey(0)
    ks = jax.random.split(key0, 12)
    bound = 1.0 / math.sqrt(d_model)

    params = {
        "Wq": jax.random.uniform(ks[0], (d_model, d_model), jnp.float32, -bound, bound),
        "bq": jax.random.uniform(ks[1], (d_model,), jnp.float32, -bound, bound),
        "Wk": jax.random.uniform(ks[2], (d_model, d_model), jnp.float32, -bound, bound),
        "bk": jax.random.uniform(ks[3], (d_model,), jnp.float32, -bound, bound),
        "Wv": jax.random.uniform(ks[4], (d_model, d_model), jnp.float32, -bound, bound),
        "bv": jax.random.uniform(ks[5], (d_model,), jnp.float32, -bound, bound),
        "Wo": jax.random.uniform(ks[6], (d_model, d_model), jnp.float32, -bound, bound),
        "bo": jax.random.uniform(ks[7], (d_model,), jnp.float32, -bound, bound),
    }

    query = jax.random.normal(ks[8], (B, Sq, d_model), jnp.float32)
    key_in = jax.random.normal(ks[9], (B, Sk, d_model), jnp.float32)
    value = jax.random.normal(ks[10], (B, Sk, d_model), jnp.float32)

    # Full path: output + attention weights.
    out, attn = multihead_cross_attention(query, key_in, value, params, num_heads,
                                          return_attention=True)
    out = jax.block_until_ready(out)
    attn = jax.block_until_ready(attn)

    # Fast path: attention-weights output elided entirely.
    out_noattn, _ = multihead_cross_attention(query, key_in, value, params, num_heads,
                                              return_attention=False)
    out_noattn = jax.block_until_ready(out_noattn)

    ref_out, ref_attn = _reference(query, key_in, value, params, num_heads)

    assert out.shape == (B, Sq, d_model) and attn.shape == (B, num_heads, Sq, Sk)
    # bf16 MXU operands + approx reciprocal -> compare against the f32 reference
    # with loosened (but still tight in absolute terms) tolerances.
    assert jnp.allclose(out, ref_out, atol=5e-2, rtol=5e-2), \
        f"out max err {jnp.max(jnp.abs(out - ref_out))}"
    assert jnp.allclose(attn, ref_attn, atol=3e-2, rtol=5e-2), \
        f"attn max err {jnp.max(jnp.abs(attn - ref_attn))}"
    assert jnp.allclose(out_noattn, out, atol=1e-5, rtol=1e-5)

    print("KERNEL_OK")
</pallas_src>

<mosaic_0001>
module attributes {stable_mosaic.version = 11 : i64} {
  func.func @_mhca_kernel(%arg0: i32, %arg1: i32, %arg2: memref<1x8x32xf32, #tpu.memory_space<vmem>>, %arg3: memref<1x16x32xf32, #tpu.memory_space<vmem>>, %arg4: memref<1x16x32xf32, #tpu.memory_space<vmem>>, %arg5: memref<32x32xbf16, #tpu.memory_space<vmem>>, %arg6: memref<32x32xbf16, #tpu.memory_space<vmem>>, %arg7: memref<32x32xbf16, #tpu.memory_space<vmem>>, %arg8: memref<32x32xbf16, #tpu.memory_space<vmem>>, %arg9: memref<1x32xf32, #tpu.memory_space<vmem>>, %arg10: memref<1x32xf32, #tpu.memory_space<vmem>>, %arg11: memref<1x32xf32, #tpu.memory_space<vmem>>, %arg12: memref<1x32xf32, #tpu.memory_space<vmem>>, %arg13: memref<1x8x32xf32, #tpu.memory_space<vmem>>, %arg14: memref<1x4x8x16xf32, #tpu.memory_space<vmem>>) attributes {dimension_semantics = [#tpu.dimension_semantics<parallel>, #tpu.dimension_semantics<parallel>], iteration_bounds = array<i64: 2, 1>, scalar_prefetch = 0 : i64, scratch_operands = 0 : i64, tpu.core_type = #tpu.core_type<tc>, window_params = [{transform_indices = @transform_0, window_bounds = array<i64: 1, 8, 32>}, {transform_indices = @transform_1, window_bounds = array<i64: 1, 16, 32>}, {transform_indices = @transform_2, window_bounds = array<i64: 1, 16, 32>}, {pipeline_mode = #tpu.pipeline_mode<synchronous>, transform_indices = @transform_3, window_bounds = array<i64: 32, 32>}, {pipeline_mode = #tpu.pipeline_mode<synchronous>, transform_indices = @transform_4, window_bounds = array<i64: 32, 32>}, {pipeline_mode = #tpu.pipeline_mode<synchronous>, transform_indices = @transform_5, window_bounds = array<i64: 32, 32>}, {pipeline_mode = #tpu.pipeline_mode<synchronous>, transform_indices = @transform_6, window_bounds = array<i64: 32, 32>}, {pipeline_mode = #tpu.pipeline_mode<synchronous>, transform_indices = @transform_7, window_bounds = array<i64: 1, 32>}, {pipeline_mode = #tpu.pipeline_mode<synchronous>, transform_indices = @transform_8, window_bounds = array<i64: 1, 32>}, {pipeline_mode = #tpu.pipeline_mode<synchronous>, transform_indices = @transform_9, window_bounds = array<i64: 1, 32>}, {pipeline_mode = #tpu.pipeline_mode<synchronous>, transform_indices = @transform_10, window_bounds = array<i64: 1, 32>}, {transform_indices = @transform_11, window_bounds = array<i64: 1, 8, 32>}, {transform_indices = @transform_12, window_bounds = array<i64: 1, 4, 8, 16>}]} {
    %c0 = arith.constant 0 : index
    %c0_0 = arith.constant 0 : index
    %c0_1 = arith.constant 0 : index
    %0 = vector.load %arg2[%c0, %c0_0, %c0_1] : memref<1x8x32xf32, #tpu.memory_space<vmem>>, vector<1x8x32xf32>
    %1 = vector.shape_cast %0 : vector<1x8x32xf32> to vector<8x32xf32>
    %2 = arith.truncf %1 : vector<8x32xf32> to vector<8x32xbf16>
    %c0_2 = arith.constant 0 : index
    %c0_3 = arith.constant 0 : index
    %c0_4 = arith.constant 0 : index
    %3 = vector.load %arg3[%c0_2, %c0_3, %c0_4] : memref<1x16x32xf32, #tpu.memory_space<vmem>>, vector<1x16x32xf32>
    %4 = vector.shape_cast %3 : vector<1x16x32xf32> to vector<16x32xf32>
    %5 = arith.truncf %4 : vector<16x32xf32> to vector<16x32xbf16>
    %c0_5 = arith.constant 0 : index
    %c0_6 = arith.constant 0 : index
    %c0_7 = arith.constant 0 : index
    %6 = vector.load %arg4[%c0_5, %c0_6, %c0_7] : memref<1x16x32xf32, #tpu.memory_space<vmem>>, vector<1x16x32xf32>
    %7 = vector.shape_cast %6 : vector<1x16x32xf32> to vector<16x32xf32>
    %8 = arith.truncf %7 : vector<16x32xf32> to vector<16x32xbf16>
    %c0_8 = arith.constant 0 : index
    %c0_9 = arith.constant 0 : index
    %9 = vector.load %arg5[%c0_8, %c0_9] : memref<32x32xbf16, #tpu.memory_space<vmem>>, vector<32x32xbf16>
    %cst = arith.constant dense<0.000000e+00> : vector<8x32xf32>
    %10 = tpu.matmul %2, %9, %cst {dimension_numbers = #tpu.dot_dimension_numbers<[1], [0], [0], [1], [0, 0, 1, 1], [], []>} : vector<8x32xbf16>, vector<32x32xbf16>, vector<8x32xf32> -> vector<8x32xf32>
    %c0_10 = arith.constant 0 : index
    %c0_11 = arith.constant 0 : index
    %11 = vector.load %arg9[%c0_10, %c0_11] : memref<1x32xf32, #tpu.memory_space<vmem>>, vector<1x32xf32>
    %12 = vector.broadcast %11 : vector<1x32xf32> to vector<8x32xf32>
    %13 = arith.addf %10, %12 : vector<8x32xf32>
    %c0_12 = arith.constant 0 : index
    %c0_13 = arith.constant 0 : index
    %14 = vector.load %arg6[%c0_12, %c0_13] : memref<32x32xbf16, #tpu.memory_space<vmem>>, vector<32x32xbf16>
    %cst_14 = arith.constant dense<0.000000e+00> : vector<16x32xf32>
    %15 = tpu.matmul %5, %14, %cst_14 {dimension_numbers = #tpu.dot_dimension_numbers<[1], [0], [0], [1], [0, 0, 1, 1], [], []>} : vector<16x32xbf16>, vector<32x32xbf16>, vector<16x32xf32> -> vector<16x32xf32>
    %c0_15 = arith.constant 0 : index
    %c0_16 = arith.constant 0 : index
    %16 = vector.load %arg10[%c0_15, %c0_16] : memref<1x32xf32, #tpu.memory_space<vmem>>, vector<1x32xf32>
    %17 = vector.broadcast %16 : vector<1x32xf32> to vector<16x32xf32>
    %18 = arith.addf %15, %17 : vector<16x32xf32>
    %c0_17 = arith.constant 0 : index
    %c0_18 = arith.constant 0 : index
    %19 = vector.load %arg7[%c0_17, %c0_18] : memref<32x32xbf16, #tpu.memory_space<vmem>>, vector<32x32xbf16>
    %cst_19 = arith.constant dense<0.000000e+00> : vector<16x32xf32>
    %20 = tpu.matmul %8, %19, %cst_19 {dimension_numbers = #tpu.dot_dimension_numbers<[1], [0], [0], [1], [0, 0, 1, 1], [], []>} : vector<16x32xbf16>, vector<32x32xbf16>, vector<16x32xf32> -> vector<16x32xf32>
    %c0_20 = arith.constant 0 : index
    %c0_21 = arith.constant 0 : index
    %21 = vector.load %arg11[%c0_20, %c0_21] : memref<1x32xf32, #tpu.memory_space<vmem>>, vector<1x32xf32>
    %22 = vector.broadcast %21 : vector<1x32xf32> to vector<16x32xf32>
    %23 = arith.addf %20, %22 : vector<16x32xf32>
    %24 = vector.extract_strided_slice %13 {offsets = [0, 0], sizes = [8, 8], strides = [1, 1]} : vector<8x32xf32> to vector<8x8xf32>
    %25 = arith.truncf %24 : vector<8x8xf32> to vector<8x8xbf16>
    %26 = vector.extract_strided_slice %18 {offsets = [0, 0], sizes = [16, 8], strides = [1, 1]} : vector<16x32xf32> to vector<16x8xf32>
    %27 = arith.truncf %26 : vector<16x8xf32> to vector<16x8xbf16>
    %28 = vector.extract_strided_slice %23 {offsets = [0, 0], sizes = [16, 8], strides = [1, 1]} : vector<16x32xf32> to vector<16x8xf32>
    %29 = arith.truncf %28 : vector<16x8xf32> to vector<16x8xbf16>
    %cst_22 = arith.constant dense<0.000000e+00> : vector<8x16xf32>
    %30 = tpu.matmul %25, %27, %cst_22 {dimension_numbers = #tpu.dot_dimension_numbers<[1], [1], [0], [0], [0, 0, 1, 0], [], []>} : vector<8x8xbf16>, vector<16x8xbf16>, vector<8x16xf32> -> vector<8x16xf32>
    %cst_23 = arith.constant 0.353553385 : f32
    %31 = vector.broadcast %cst_23 : f32 to vector<8x16xf32>
    %32 = arith.mulf %30, %31 : vector<8x16xf32>
    %cst_24 = arith.constant dense<0xFF800000> : vector<8xf32>
    %33 = vector.multi_reduction <maximumf>, %32, %cst_24 [1] : vector<8x16xf32> to vector<8xf32>
    %34 = vector.shape_cast %33 : vector<8xf32> to vector<8x1xf32>
    %35 = vector.broadcast %34 : vector<8x1xf32> to vector<8x16xf32>
    %36 = arith.subf %32, %35 : vector<8x16xf32>
    %37 = math.exp %36 : vector<8x16xf32>
    %cst_25 = arith.constant dense<0.000000e+00> : vector<8xf32>
    %38 = vector.multi_reduction <add>, %37, %cst_25 [1] : vector<8x16xf32> to vector<8xf32>
    %39 = vector.shape_cast %38 : vector<8xf32> to vector<8x1xf32>
    %40 = tpu.reciprocal %39 {approx = true} : vector<8x1xf32> -> vector<8x1xf32>
    %41 = vector.broadcast %40 : vector<8x1xf32> to vector<8x16xf32>
    %42 = arith.mulf %37, %41 : vector<8x16xf32>
    %c0_26 = arith.constant 0 : index
    %c0_27 = arith.constant 0 : index
    %c0_28 = arith.constant 0 : index
    %c0_29 = arith.constant 0 : index
    %43 = vector.load %arg14[%c0_26, %c0_27, %c0_28, %c0_29] : memref<1x4x8x16xf32, #tpu.memory_space<vmem>>, vector<1x1x8x16xf32>
    %44 = vector.shape_cast %43 : vector<1x1x8x16xf32> to vector<8x16xf32>
    %45 = vector.shape_cast %42 : vector<8x16xf32> to vector<1x1x8x16xf32>
    tpu.vector_store %arg14[%c0_26, %c0_27, %c0_28, %c0_29], %45 {strides = array<i32>} : memref<1x4x8x16xf32, #tpu.memory_space<vmem>>, vector<1x1x8x16xf32>,
    %46 = arith.truncf %42 : vector<8x16xf32> to vector<8x16xbf16>
    %cst_30 = arith.constant dense<0.000000e+00> : vector<8x8xf32>
    %47 = tpu.matmul %46, %29, %cst_30 {dimension_numbers = #tpu.dot_dimension_numbers<[1], [0], [0], [1], [0, 0, 1, 1], [], []>} : vector<8x16xbf16>, vector<16x8xbf16>, vector<8x8xf32> -> vector<8x8xf32>
    %48 = vector.extract_strided_slice %13 {offsets = [0, 8], sizes = [8, 8], strides = [1, 1]} : vector<8x32xf32> to vector<8x8xf32>
    %49 = arith.truncf %48 : vector<8x8xf32> to vector<8x8xbf16>
    %50 = vector.extract_strided_slice %18 {offsets = [0, 8], sizes = [16, 8], strides = [1, 1]} : vector<16x32xf32> to vector<16x8xf32>
    %51 = arith.truncf %50 : vector<16x8xf32> to vector<16x8xbf16>
    %52 = vector.extract_strided_slice %23 {offsets = [0, 8], sizes = [16, 8], strides = [1, 1]} : vector<16x32xf32> to vector<16x8xf32>
    %53 = arith.truncf %52 : vector<16x8xf32> to vector<16x8xbf16>
    %cst_31 = arith.constant dense<0.000000e+00> : vector<8x16xf32>
    %54 = tpu.matmul %49, %51, %cst_31 {dimension_numbers = #tpu.dot_dimension_numbers<[1], [1], [0], [0], [0, 0, 1, 0], [], []>} : vector<8x8xbf16>, vector<16x8xbf16>, vector<8x16xf32> -> vector<8x16xf32>
    %cst_32 = arith.constant 0.353553385 : f32
    %55 = vector.broadcast %cst_32 : f32 to vector<8x16xf32>
    %56 = arith.mulf %54, %55 : vector<8x16xf32>
    %cst_33 = arith.constant dense<0xFF800000> : vector<8xf32>
    %57 = vector.multi_reduction <maximumf>, %56, %cst_33 [1] : vector<8x16xf32> to vector<8xf32>
    %58 = vector.shape_cast %57 : vector<8xf32> to vector<8x1xf32>
    %59 = vector.broadcast %58 : vector<8x1xf32> to vector<8x16xf32>
    %60 = arith.subf %56, %59 : vector<8x16xf32>
    %61 = math.exp %60 : vector<8x16xf32>
    %cst_34 = arith.constant dense<0.000000e+00> : vector<8xf32>
    %62 = vector.multi_reduction <add>, %61, %cst_34 [1] : vector<8x16xf32> to vector<8xf32>
    %63 = vector.shape_cast %62 : vector<8xf32> to vector<8x1xf32>
    %64 = tpu.reciprocal %63 {approx = true} : vector<8x1xf32> -> vector<8x1xf32>
    %65 = vector.broadcast %64 : vector<8x1xf32> to vector<8x16xf32>
    %66 = arith.mulf %61, %65 : vector<8x16xf32>
    %c0_35 = arith.constant 0 : index
    %c1 = arith.constant 1 : index
    %c0_36 = arith.constant 0 : index
    %c0_37 = arith.constant 0 : index
    %67 = vector.load %arg14[%c0_35, %c1, %c0_36, %c0_37] : memref<1x4x8x16xf32, #tpu.memory_space<vmem>>, vector<1x1x8x16xf32>
    %68 = vector.shape_cast %67 : vector<1x1x8x16xf32> to vector<8x16xf32>
    %69 = vector.shape_cast %66 : vector<8x16xf32> to vector<1x1x8x16xf32>
    tpu.vector_store %arg14[%c0_35, %c1, %c0_36, %c0_37], %69 {strides = array<i32>} : memref<1x4x8x16xf32, #tpu.memory_space<vmem>>, vector<1x1x8x16xf32>,
    %70 = arith.truncf %66 : vector<8x16xf32> to vector<8x16xbf16>
    %cst_38 = arith.constant dense<0.000000e+00> : vector<8x8xf32>
    %71 = tpu.matmul %70, %53, %cst_38 {dimension_numbers = #tpu.dot_dimension_numbers<[1], [0], [0], [1], [0, 0, 1, 1], [], []>} : vector<8x16xbf16>, vector<16x8xbf16>, vector<8x8xf32> -> vector<8x8xf32>
    %72 = vector.extract_strided_slice %13 {offsets = [0, 16], sizes = [8, 8], strides = [1, 1]} : vector<8x32xf32> to vector<8x8xf32>
    %73 = arith.truncf %72 : vector<8x8xf32> to vector<8x8xbf16>
    %74 = vector.extract_strided_slice %18 {offsets = [0, 16], sizes = [16, 8], strides = [1, 1]} : vector<16x32xf32> to vector<16x8xf32>
    %75 = arith.truncf %74 : vector<16x8xf32> to vector<16x8xbf16>
    %76 = vector.extract_strided_slice %23 {offsets = [0, 16], sizes = [16, 8], strides = [1, 1]} : vector<16x32xf32> to vector<16x8xf32>
    %77 = arith.truncf %76 : vector<16x8xf32> to vector<16x8xbf16>
    %cst_39 = arith.constant dense<0.000000e+00> : vector<8x16xf32>
    %78 = tpu.matmul %73, %75, %cst_39 {dimension_numbers = #tpu.dot_dimension_numbers<[1], [1], [0], [0], [0, 0, 1, 0], [], []>} : vector<8x8xbf16>, vector<16x8xbf16>, vector<8x16xf32> -> vector<8x16xf32>
    %cst_40 = arith.constant 0.353553385 : f32
    %79 = vector.broadcast %cst_40 : f32 to vector<8x16xf32>
    %80 = arith.mulf %78, %79 : vector<8x16xf32>
    %cst_41 = arith.constant dense<0xFF800000> : vector<8xf32>
    %81 = vector.multi_reduction <maximumf>, %80, %cst_41 [1] : vector<8x16xf32> to vector<8xf32>
    %82 = vector.shape_cast %81 : vector<8xf32> to vector<8x1xf32>
    %83 = vector.broadcast %82 : vector<8x1xf32> to vector<8x16xf32>
    %84 = arith.subf %80, %83 : vector<8x16xf32>
    %85 = math.exp %84 : vector<8x16xf32>
    %cst_42 = arith.constant dense<0.000000e+00> : vector<8xf32>
    %86 = vector.multi_reduction <add>, %85, %cst_42 [1] : vector<8x16xf32> to vector<8xf32>
    %87 = vector.shape_cast %86 : vector<8xf32> to vector<8x1xf32>
    %88 = tpu.reciprocal %87 {approx = true} : vector<8x1xf32> -> vector<8x1xf32>
    %89 = vector.broadcast %88 : vector<8x1xf32> to vector<8x16xf32>
    %90 = arith.mulf %85, %89 : vector<8x16xf32>
    %c0_43 = arith.constant 0 : index
    %c2 = arith.constant 2 : index
    %c0_44 = arith.constant 0 : index
    %c0_45 = arith.constant 0 : index
    %91 = vector.load %arg14[%c0_43, %c2, %c0_44, %c0_45] : memref<1x4x8x16xf32, #tpu.memory_space<vmem>>, vector<1x1x8x16xf32>
    %92 = vector.shape_cast %91 : vector<1x1x8x16xf32> to vector<8x16xf32>
    %93 = vector.shape_cast %90 : vector<8x16xf32> to vector<1x1x8x16xf32>
    tpu.vector_store %arg14[%c0_43, %c2, %c0_44, %c0_45], %93 {strides = array<i32>} : memref<1x4x8x16xf32, #tpu.memory_space<vmem>>, vector<1x1x8x16xf32>,
    %94 = arith.truncf %90 : vector<8x16xf32> to vector<8x16xbf16>
    %cst_46 = arith.constant dense<0.000000e+00> : vector<8x8xf32>
    %95 = tpu.matmul %94, %77, %cst_46 {dimension_numbers = #tpu.dot_dimension_numbers<[1], [0], [0], [1], [0, 0, 1, 1], [], []>} : vector<8x16xbf16>, vector<16x8xbf16>, vector<8x8xf32> -> vector<8x8xf32>
    %96 = vector.extract_strided_slice %13 {offsets = [0, 24], sizes = [8, 8], strides = [1, 1]} : vector<8x32xf32> to vector<8x8xf32>
    %97 = arith.truncf %96 : vector<8x8xf32> to vector<8x8xbf16>
    %98 = vector.extract_strided_slice %18 {offsets = [0, 24], sizes = [16, 8], strides = [1, 1]} : vector<16x32xf32> to vector<16x8xf32>
    %99 = arith.truncf %98 : vector<16x8xf32> to vector<16x8xbf16>
    %100 = vector.extract_strided_slice %23 {offsets = [0, 24], sizes = [16, 8], strides = [1, 1]} : vector<16x32xf32> to vector<16x8xf32>
    %101 = arith.truncf %100 : vector<16x8xf32> to vector<16x8xbf16>
    %cst_47 = arith.constant dense<0.000000e+00> : vector<8x16xf32>
    %102 = tpu.matmul %97, %99, %cst_47 {dimension_numbers = #tpu.dot_dimension_numbers<[1], [1], [0], [0], [0, 0, 1, 0], [], []>} : vector<8x8xbf16>, vector<16x8xbf16>, vector<8x16xf32> -> vector<8x16xf32>
    %cst_48 = arith.constant 0.353553385 : f32
    %103 = vector.broadcast %cst_48 : f32 to vector<8x16xf32>
    %104 = arith.mulf %102, %103 : vector<8x16xf32>
    %cst_49 = arith.constant dense<0xFF800000> : vector<8xf32>
    %105 = vector.multi_reduction <maximumf>, %104, %cst_49 [1] : vector<8x16xf32> to vector<8xf32>
    %106 = vector.shape_cast %105 : vector<8xf32> to vector<8x1xf32>
    %107 = vector.broadcast %106 : vector<8x1xf32> to vector<8x16xf32>
    %108 = arith.subf %104, %107 : vector<8x16xf32>
    %109 = math.exp %108 : vector<8x16xf32>
    %cst_50 = arith.constant dense<0.000000e+00> : vector<8xf32>
    %110 = vector.multi_reduction <add>, %109, %cst_50 [1] : vector<8x16xf32> to vector<8xf32>
    %111 = vector.shape_cast %110 : vector<8xf32> to vector<8x1xf32>
    %112 = tpu.reciprocal %111 {approx = true} : vector<8x1xf32> -> vector<8x1xf32>
    %113 = vector.broadcast %112 : vector<8x1xf32> to vector<8x16xf32>
    %114 = arith.mulf %109, %113 : vector<8x16xf32>
    %c0_51 = arith.constant 0 : index
    %c3 = arith.constant 3 : index
    %c0_52 = arith.constant 0 : index
    %c0_53 = arith.constant 0 : index
    %115 = vector.load %arg14[%c0_51, %c3, %c0_52, %c0_53] : memref<1x4x8x16xf32, #tpu.memory_space<vmem>>, vector<1x1x8x16xf32>
    %116 = vector.shape_cast %115 : vector<1x1x8x16xf32> to vector<8x16xf32>
    %117 = vector.shape_cast %114 : vector<8x16xf32> to vector<1x1x8x16xf32>
    tpu.vector_store %arg14[%c0_51, %c3, %c0_52, %c0_53], %117 {strides = array<i32>} : memref<1x4x8x16xf32, #tpu.memory_space<vmem>>, vector<1x1x8x16xf32>,
    %118 = arith.truncf %114 : vector<8x16xf32> to vector<8x16xbf16>
    %cst_54 = arith.constant dense<0.000000e+00> : vector<8x8xf32>
    %119 = tpu.matmul %118, %101, %cst_54 {dimension_numbers = #tpu.dot_dimension_numbers<[1], [0], [0], [1], [0, 0, 1, 1], [], []>} : vector<8x16xbf16>, vector<16x8xbf16>, vector<8x8xf32> -> vector<8x8xf32>
    %120 = tpu.concatenate %47, %71, %95, %119 in 1 : vector<8x8xf32>, vector<8x8xf32>, vector<8x8xf32>, vector<8x8xf32> -> vector<8x32xf32>
    %121 = arith.truncf %120 : vector<8x32xf32> to vector<8x32xbf16>
    %c0_55 = arith.constant 0 : index
    %c0_56 = arith.constant 0 : index
    %122 = vector.load %arg8[%c0_55, %c0_56] : memref<32x32xbf16, #tpu.memory_space<vmem>>, vector<32x32xbf16>
    %cst_57 = arith.constant dense<0.000000e+00> : vector<8x32xf32>
    %123 = tpu.matmul %121, %122, %cst_57 {dimension_numbers = #tpu.dot_dimension_numbers<[1], [0], [0], [1], [0, 0, 1, 1], [], []>} : vector<8x32xbf16>, vector<32x32xbf16>, vector<8x32xf32> -> vector<8x32xf32>
    %c0_58 = arith.constant 0 : index
    %c0_59 = arith.constant 0 : index
    %124 = vector.load %arg12[%c0_58, %c0_59] : memref<1x32xf32, #tpu.memory_space<vmem>>, vector<1x32xf32>
    %125 = vector.broadcast %124 : vector<1x32xf32> to vector<8x32xf32>
    %126 = arith.addf %123, %125 : vector<8x32xf32>
    %c0_60 = arith.constant 0 : index
    %c0_61 = arith.constant 0 : index
    %c0_62 = arith.constant 0 : index
    %127 = vector.load %arg13[%c0_60, %c0_61, %c0_62] : memref<1x8x32xf32, #tpu.memory_space<vmem>>, vector<1x8x32xf32>
    %128 = vector.shape_cast %127 : vector<1x8x32xf32> to vector<8x32xf32>
    %129 = vector.shape_cast %126 : vector<8x32xf32> to vector<1x8x32xf32>
    tpu.vector_store %arg13[%c0_60, %c0_61, %c0_62], %129 {strides = array<i32>} : memref<1x8x32xf32, #tpu.memory_space<vmem>>, vector<1x8x32xf32>,
    return
  }
  func.func @transform_0(%arg0: i32, %arg1: i32) -> (i32, i32, i32) {
    %c0_i32 = arith.constant 0 : i32
    %c0_i32_0 = arith.constant 0 : i32
    return %arg0, %arg1, %c0_i32 : i32, i32, i32
  }
  func.func @transform_1(%arg0: i32, %arg1: i32) -> (i32, i32, i32) {
    %c0_i32 = arith.constant 0 : i32
    %c0_i32_0 = arith.constant 0 : i32
    %c0_i32_1 = arith.constant 0 : i32
    return %arg0, %c0_i32, %c0_i32_0 : i32, i32, i32
  }
  func.func @transform_2(%arg0: i32, %arg1: i32) -> (i32, i32, i32) {
    %c0_i32 = arith.constant 0 : i32
    %c0_i32_0 = arith.constant 0 : i32
    %c0_i32_1 = arith.constant 0 : i32
    return %arg0, %c0_i32, %c0_i32_0 : i32, i32, i32
  }
  func.func @transform_3(%arg0: i32, %arg1: i32) -> (i32, i32) {
    %c0_i32 = arith.constant 0 : i32
    %c0_i32_0 = arith.constant 0 : i32
    %c0_i32_1 = arith.constant 0 : i32
    return %c0_i32, %c0_i32_0 : i32, i32
  }
  func.func @transform_4(%arg0: i32, %arg1: i32) -> (i32, i32) {
    %c0_i32 = arith.constant 0 : i32
    %c0_i32_0 = arith.constant 0 : i32
    %c0_i32_1 = arith.constant 0 : i32
    return %c0_i32, %c0_i32_0 : i32, i32
  }
  func.func @transform_5(%arg0: i32, %arg1: i32) -> (i32, i32) {
    %c0_i32 = arith.constant 0 : i32
    %c0_i32_0 = arith.constant 0 : i32
    %c0_i32_1 = arith.constant 0 : i32
    return %c0_i32, %c0_i32_0 : i32, i32
  }
  func.func @transform_6(%arg0: i32, %arg1: i32) -> (i32, i32) {
    %c0_i32 = arith.constant 0 : i32
    %c0_i32_0 = arith.constant 0 : i32
    %c0_i32_1 = arith.constant 0 : i32
    return %c0_i32, %c0_i32_0 : i32, i32
  }
  func.func @transform_7(%arg0: i32, %arg1: i32) -> (i32, i32) {
    %c0_i32 = arith.constant 0 : i32
    %c0_i32_0 = arith.constant 0 : i32
    %c0_i32_1 = arith.constant 0 : i32
    return %c0_i32, %c0_i32_0 : i32, i32
  }
  func.func @transform_8(%arg0: i32, %arg1: i32) -> (i32, i32) {
    %c0_i32 = arith.constant 0 : i32
    %c0_i32_0 = arith.constant 0 : i32
    %c0_i32_1 = arith.constant 0 : i32
    return %c0_i32, %c0_i32_0 : i32, i32
  }
  func.func @transform_9(%arg0: i32, %arg1: i32) -> (i32, i32) {
    %c0_i32 = arith.constant 0 : i32
    %c0_i32_0 = arith.constant 0 : i32
    %c0_i32_1 = arith.constant 0 : i32
    return %c0_i32, %c0_i32_0 : i32, i32
  }
  func.func @transform_10(%arg0: i32, %arg1: i32) -> (i32, i32) {
    %c0_i32 = arith.constant 0 : i32
    %c0_i32_0 = arith.constant 0 : i32
    %c0_i32_1 = arith.constant 0 : i32
    return %c0_i32, %c0_i32_0 : i32, i32
  }
  func.func @transform_11(%arg0: i32, %arg1: i32) -> (i32, i32, i32) {
    %c0_i32 = arith.constant 0 : i32
    %c0_i32_0 = arith.constant 0 : i32
    return %arg0, %arg1, %c0_i32 : i32, i32, i32
  }
  func.func @transform_12(%arg0: i32, %arg1: i32) -> (i32, i32, i32, i32) {
    %c0_i32 = arith.constant 0 : i32
    %c0_i32_0 = arith.constant 0 : i32
    %c0_i32_1 = arith.constant 0 : i32
    return %arg0, %c0_i32, %arg1, %c0_i32_0 : i32, i32, i32, i32
  }
}

</mosaic_0001>

<llo_original>
// kernel: tpu_custom_call.1
$region0: #{tpu_custom_call.1}
  #allocation0 [shape = 'u32[]', space=smem, size = 0x4, offset = 0x4, fixed_abs, tag = 'smem constant byte address 0x4 - core index']
  #allocation1 [shape = 'u32[144,128]{1,0:T(1,128)}', space=vmem, size = 0x12000, scoped, tag = 'internal scratch']
  %s0 = inlined_call_operand.hbm [shape: f32[2,8,32], index: 0, kind: input, shape index: {}]
  %s1 = inlined_call_operand.hbm [shape: f32[2,16,32], index: 1, kind: input, shape index: {}]
  %s2 = inlined_call_operand.hbm [shape: f32[2,16,32], index: 2, kind: input, shape index: {}]
  %s3 = inlined_call_operand.hbm [shape: bf16[32,32], index: 3, kind: input, shape index: {}]
  %s4 = inlined_call_operand.hbm [shape: bf16[32,32], index: 4, kind: input, shape index: {}]
  %s5 = inlined_call_operand.hbm [shape: bf16[32,32], index: 5, kind: input, shape index: {}]
  %s6 = inlined_call_operand.hbm [shape: bf16[32,32], index: 6, kind: input, shape index: {}]
  %s7 = inlined_call_operand.vmem [shape: f32[1,32], index: 7, kind: input, shape index: {}]
  %s8 = inlined_call_operand.vmem [shape: f32[1,32], index: 8, kind: input, shape index: {}]
  %s9 = inlined_call_operand.vmem [shape: f32[1,32], index: 9, kind: input, shape index: {}]
  %s10 = inlined_call_operand.vmem [shape: f32[1,32], index: 10, kind: input, shape index: {}]
  %s11 = inlined_call_operand.hbm [shape: f32[2,8,32], index: 11, kind: output, shape index: {0}]
  %s12 = inlined_call_operand.hbm [shape: f32[2,4,8,16], index: 12, kind: output, shape index: {1}]
  %13 = xla_tuple %s11, %s12
  %s14 = sld [smem:[#allocation0]]
  $region113: #{tpu_custom_call.1} parent=0
    _
  %s16 = ssub.s32 1, %s14
  %s17 = scalar_select 0, %s16, %s14
  $region1: #{tpu_custom_call.1} parent=0
    #allocation2 [shape = 'u8[8192]{0}', space=vmem, size = 0x2000, scoped, tag = 'input window, operand 0']
    #allocation3 [shape = 's32[2]{0}', space=sflag, size = 0x8, scoped, tag = 'scoped memory for tpu_custom_call.1']
    #allocation4 [shape = 's32[2]{0}', space=sflag, size = 0x8, scoped, tag = 'scoped memory for tpu_custom_call.1']
    #allocation5 [shape = 'u8[16384]{0}', space=vmem, size = 0x4000, scoped, tag = 'input window, operand 1']
    #allocation6 [shape = 's32[2]{0}', space=sflag, size = 0x8, scoped, tag = 'scoped memory for tpu_custom_call.1']
    #allocation7 [shape = 'u8[16384]{0}', space=vmem, size = 0x4000, scoped, tag = 'input window, operand 2']
    #allocation8 [shape = 'u8[8192]{0}', space=vmem, size = 0x2000, scoped, tag = 'input window, operand 3, single buffered']
    #allocation9 [shape = 's32[1]{0}', space=sflag, size = 0x4, scoped, tag = 'scoped memory for tpu_custom_call.1']
    #allocation10 [shape = 'u8[8192]{0}', space=vmem, size = 0x2000, scoped, tag = 'input window, operand 4, single buffered']
    #allocation11 [shape = 'u8[8192]{0}', space=vmem, size = 0x2000, scoped, tag = 'input window, operand 5, single buffered']
    #allocation12 [shape = 's32[1]{0}', space=sflag, size = 0x4, scoped, tag = 'scoped memory for tpu_custom_call.1']
    #allocation13 [shape = 'u8[8192]{0}', space=vmem, size = 0x2000, scoped, tag = 'input window, operand 6, single buffered']
    #allocation14 [shape = 'u8[8192]{0}', space=vmem, size = 0x2000, scoped, tag = 'output window, operand 0']
    #allocation15 [shape = 'u8[32768]{0}', space=vmem, size = 0x8000, scoped, tag = 'output window, operand 1']
    #allocation16 [shape = 's32[2]{0}', space=sflag, size = 0x8, scoped, tag = 'scoped memory for tpu_custom_call.1']
    %18 = vsyncpa [#allocation3], 0
    %s19 = scalar_lea.sflag [#allocation3], 1
    %20 = vsyncpa %s19, 0
    %21 = vsyncpa [#allocation6], 0
    %s22 = scalar_lea.sflag [#allocation6], 1
    %23 = vsyncpa %s22, 0
    %24 = vsyncpa [#allocation9], 0
    %25 = vsyncpa [#allocation12], 0
    %26 = vsyncpa [#allocation4], 0
    %s27 = scalar_lea.sflag [#allocation4], 1
    %28 = vsyncpa %s27, 0
    %29 = vsyncpa [#allocation16], 0
    %s30 = scalar_lea.sflag [#allocation16], 1
    %31 = vsyncpa %s30, 0
    loop: start=0, step=1, limit=4
    $region2: #{tpu_custom_call.1} parent=1 // loop_pre_header
      _
    $region3: #{tpu_custom_call.1} parent=1 // loop_header
      %s33 = sphi 0, %s37
      %p34 = scmp.ge.s32.totalorder %s33, 4
      %s40 = sphi 0, %s52
      %s41 = sphi 0, %s48
      %s42 = sphi 0, %s40
      %s43 = sphi 0, %s41
      %s44 = sphi 0, %s42
      %s45 = sphi 0, %s43
      %s57 = sphi 0, %s59
      %s60 = sphi 0, %s57
      %s61 = sphi 0, %s60
      %s77 = sphi 0, %s61
      %s83 = sphi 0, %s85
      %s86 = sphi 0, %s83
      %s87 = sphi 0, %s86
      %s103 = sphi 0, %s87
      %s109 = sphi 0, %s111
      %s112 = sphi 0, %s109
      %s113 = sphi 0, %s112
      %s129 = sphi 0, %s113
      %s133 = sphi 0, %s133
      %s135 = sphi 0, %s133
      %s136 = sphi 0, %s135
      %s150 = sphi 0, %s136
      %s154 = sphi 0, %s154
      %s156 = sphi 0, %s154
      %s157 = sphi 0, %s156
      %s171 = sphi 0, %s157
      %s175 = sphi 0, %s175
      %s177 = sphi 0, %s175
      %s178 = sphi 0, %s177
      %s192 = sphi 0, %s178
      %s196 = sphi 0, %s196
      %s198 = sphi 0, %s196
      %s199 = sphi 0, %s198
      %s213 = sphi 0, %s199
      %s217 = sphi 0, %s217
      %s219 = sphi 0, %s217
      %s220 = sphi 0, %s219
      %s234 = sphi 0, %s220
      %s238 = sphi 0, %s238
      %s240 = sphi 0, %s238
      %s241 = sphi 0, %s240
      %s255 = sphi 0, %s241
      %s259 = sphi 0, %s259
      %s261 = sphi 0, %s259
      %s262 = sphi 0, %s261
      %s276 = sphi 0, %s262
      %s280 = sphi 0, %s280
      %s282 = sphi 0, %s280
      %s283 = sphi 0, %s282
      %s297 = sphi 0, %s283
      %s305 = sphi 0, %s307
      %s308 = sphi 0, %s305
      %s309 = sphi 0, %s308
      %s325 = sphi 0, %s309
      %s333 = sphi 0, %s335
      %s336 = sphi 0, %s333
      %s337 = sphi 0, %s336
      %s353 = sphi 0, %s337
    $region4: #{tpu_custom_call.1} parent=1 // loop_header_branch
      %36 = sbr.rel (%p34) target = $region8
    $region5: #{tpu_custom_call.1} parent=1 // loop_body
      %s38 = ssub.s32 %s33, 1
      %s39 = ssub.s32 %s33, 2
      %s46 = sadd.s32 1, %s41
      %p47 = scmp.ge.s32.totalorder %s46, 1
      %s48 = scalar_select %p47, 0, %s46
      %s49 = sadd.s32 1, %s40
      %s50 = scalar_select %p47, %s49, %s40
      %p51 = scmp.ge.s32.totalorder %s50, 2
      %s52 = scalar_select %p51, 0, %s50
      %s53 = ssub.s32 %s40, %s52
      %s54 = ssub.s32 %s41, %s48
      %s55 = sor.u32 %s53, %s54
      %p56 = scmp.eq.s32.totalorder %s55, 0
      %s58 = sadd.s32 %s57, 1
      %s59 = scalar_select %p56, %s57, %s58
      %p62 = pneg %p56
      %p63 = scmp.eq.s32.totalorder %s33, 1
      %p64 = por %p62, %p63
      %p65 = scmp.ne.s32.totalorder %s57, %s60
      %p66 = scmp.eq.s32.totalorder %s33, 0
      %p67 = por %p65, %p66
      %p68 = scmp.ne.s32.totalorder %s57, %s60
      %p69 = scmp.eq.s32.totalorder %s38, 1
      %p70 = por %p68, %p69
      %p71 = scmp.ne.s32.totalorder %s60, %s61
      %p72 = scmp.eq.s32.totalorder %s38, 0
      %p73 = por %p71, %p72
      %p74 = scmp.ne.s32.totalorder %s60, %s61
      %p75 = scmp.eq.s32.totalorder %s39, 1
      %p76 = por %p74, %p75
      %p78 = scmp.ne.s32.totalorder %s61, %s77
      %p79 = scmp.eq.s32.totalorder %s39, 0
      %p80 = por %p78, %p79
      %s81 = ssub.s32 %s40, %s52
      %p82 = scmp.eq.s32.totalorder %s81, 0
      %s84 = sadd.s32 %s83, 1
      %s85 = scalar_select %p82, %s83, %s84
      %p88 = pneg %p82
      %p89 = scmp.eq.s32.totalorder %s33, 1
      %p90 = por %p88, %p89
      %p91 = scmp.ne.s32.totalorder %s83, %s86
      %p92 = scmp.eq.s32.totalorder %s33, 0
      %p93 = por %p91, %p92
      %p94 = scmp.ne.s32.totalorder %s83, %s86
      %p95 = scmp.eq.s32.totalorder %s38, 1
      %p96 = por %p94, %p95
      %p97 = scmp.ne.s32.totalorder %s86, %s87
      %p98 = scmp.eq.s32.totalorder %s38, 0
      %p99 = por %p97, %p98
      %p100 = scmp.ne.s32.totalorder %s86, %s87
      %p101 = scmp.eq.s32.totalorder %s39, 1
      %p102 = por %p100, %p101
      %p104 = scmp.ne.s32.totalorder %s87, %s103
      %p105 = scmp.eq.s32.totalorder %s39, 0
      %p106 = por %p104, %p105
      %s107 = ssub.s32 %s40, %s52
      %p108 = scmp.eq.s32.totalorder %s107, 0
      %s110 = sadd.s32 %s109, 1
      %s111 = scalar_select %p108, %s109, %s110
      %p114 = pneg %p108
      %p115 = scmp.eq.s32.totalorder %s33, 1
      %p116 = por %p114, %p115
      %p117 = scmp.ne.s32.totalorder %s109, %s112
      %p118 = scmp.eq.s32.totalorder %s33, 0
      %p119 = por %p117, %p118
      %p120 = scmp.ne.s32.totalorder %s109, %s112
      %p121 = scmp.eq.s32.totalorder %s38, 1
      %p122 = por %p120, %p121
      %p123 = scmp.ne.s32.totalorder %s112, %s113
      %p124 = scmp.eq.s32.totalorder %s38, 0
      %p125 = por %p123, %p124
      %p126 = scmp.ne.s32.totalorder %s112, %s113
      %p127 = scmp.eq.s32.totalorder %s39, 1
      %p128 = por %p126, %p127
      %p130 = scmp.ne.s32.totalorder %s113, %s129
      %p131 = scmp.eq.s32.totalorder %s39, 0
      %p132 = por %p130, %p131
      %s134 = sadd.s32 %s133, 1
      %p137 = scmp.eq.s32.totalorder %s33, 1
      %p138 = scmp.ne.s32.totalorder %s133, %s135
      %p139 = scmp.eq.s32.totalorder %s33, 0
      %p140 = por %p138, %p139
      %p141 = scmp.ne.s32.totalorder %s133, %s135
      %p142 = scmp.eq.s32.totalorder %s38, 1
      %p143 = por %p141, %p142
      %p144 = scmp.ne.s32.totalorder %s135, %s136
      %p145 = scmp.eq.s32.totalorder %s38, 0
      %p146 = por %p144, %p145
      %p147 = scmp.ne.s32.totalorder %s135, %s136
      %p148 = scmp.eq.s32.totalorder %s39, 1
      %p149 = por %p147, %p148
      %p151 = scmp.ne.s32.totalorder %s136, %s150
      %p152 = scmp.eq.s32.totalorder %s39, 0
      %p153 = por %p151, %p152
      %s155 = sadd.s32 %s154, 1
      %p158 = scmp.eq.s32.totalorder %s33, 1
      %p159 = scmp.ne.s32.totalorder %s154, %s156
      %p160 = scmp.eq.s32.totalorder %s33, 0
      %p161 = por %p159, %p160
      %p162 = scmp.ne.s32.totalorder %s154, %s156
      %p163 = scmp.eq.s32.totalorder %s38, 1
      %p164 = por %p162, %p163
      %p165 = scmp.ne.s32.totalorder %s156, %s157
      %p166 = scmp.eq.s32.totalorder %s38, 0
      %p167 = por %p165, %p166
      %p168 = scmp.ne.s32.totalorder %s156, %s157
      %p169 = scmp.eq.s32.totalorder %s39, 1
      %p170 = por %p168, %p169
      %p172 = scmp.ne.s32.totalorder %s157, %s171
      %p173 = scmp.eq.s32.totalorder %s39, 0
      %p174 = por %p172, %p173
      %s176 = sadd.s32 %s175, 1
      %p179 = scmp.eq.s32.totalorder %s33, 1
      %p180 = scmp.ne.s32.totalorder %s175, %s177
      %p181 = scmp.eq.s32.totalorder %s33, 0
      %p182 = por %p180, %p181
      %p183 = scmp.ne.s32.totalorder %s175, %s177
      %p184 = scmp.eq.s32.totalorder %s38, 1
      %p185 = por %p183, %p184
      %p186 = scmp.ne.s32.totalorder %s177, %s178
      %p187 = scmp.eq.s32.totalorder %s38, 0
      %p188 = por %p186, %p187
      %p189 = scmp.ne.s32.totalorder %s177, %s178
      %p190 = scmp.eq.s32.totalorder %s39, 1
      %p191 = por %p189, %p190
      %p193 = scmp.ne.s32.totalorder %s178, %s192
      %p194 = scmp.eq.s32.totalorder %s39, 0
      %p195 = por %p193, %p194
      %s197 = sadd.s32 %s196, 1
      %p200 = scmp.eq.s32.totalorder %s33, 1
      %p201 = scmp.ne.s32.totalorder %s196, %s198
      %p202 = scmp.eq.s32.totalorder %s33, 0
      %p203 = por %p201, %p202
      %p204 = scmp.ne.s32.totalorder %s196, %s198
      %p205 = scmp.eq.s32.totalorder %s38, 1
      %p206 = por %p204, %p205
      %p207 = scmp.ne.s32.totalorder %s198, %s199
      %p208 = scmp.eq.s32.totalorder %s38, 0
      %p209 = por %p207, %p208
      %p210 = scmp.ne.s32.totalorder %s198, %s199
      %p211 = scmp.eq.s32.totalorder %s39, 1
      %p212 = por %p210, %p211
      %p214 = scmp.ne.s32.totalorder %s199, %s213
      %p215 = scmp.eq.s32.totalorder %s39, 0
      %p216 = por %p214, %p215
      %s218 = sadd.s32 %s217, 1
      %p221 = scmp.eq.s32.totalorder %s33, 1
      %p222 = scmp.ne.s32.totalorder %s217, %s219
      %p223 = scmp.eq.s32.totalorder %s33, 0
      %p224 = por %p222, %p223
      %p225 = scmp.ne.s32.totalorder %s217, %s219
      %p226 = scmp.eq.s32.totalorder %s38, 1
      %p227 = por %p225, %p226
      %p228 = scmp.ne.s32.totalorder %s219, %s220
      %p229 = scmp.eq.s32.totalorder %s38, 0
      %p230 = por %p228, %p229
      %p231 = scmp.ne.s32.totalorder %s219, %s220
      %p232 = scmp.eq.s32.totalorder %s39, 1
      %p233 = por %p231, %p232
      %p235 = scmp.ne.s32.totalorder %s220, %s234
      %p236 = scmp.eq.s32.totalorder %s39, 0
      %p237 = por %p235, %p236
      %s239 = sadd.s32 %s238, 1
      %p242 = scmp.eq.s32.totalorder %s33, 1
      %p243 = scmp.ne.s32.totalorder %s238, %s240
      %p244 = scmp.eq.s32.totalorder %s33, 0
      %p245 = por %p243, %p244
      %p246 = scmp.ne.s32.totalorder %s238, %s240
      %p247 = scmp.eq.s32.totalorder %s38, 1
      %p248 = por %p246, %p247
      %p249 = scmp.ne.s32.totalorder %s240, %s241
      %p250 = scmp.eq.s32.totalorder %s38, 0
      %p251 = por %p249, %p250
      %p252 = scmp.ne.s32.totalorder %s240, %s241
      %p253 = scmp.eq.s32.totalorder %s39, 1
      %p254 = por %p252, %p253
      %p256 = scmp.ne.s32.totalorder %s241, %s255
      %p257 = scmp.eq.s32.totalorder %s39, 0
      %p258 = por %p256, %p257
      %s260 = sadd.s32 %s259, 1
      %p263 = scmp.eq.s32.totalorder %s33, 1
      %p264 = scmp.ne.s32.totalorder %s259, %s261
      %p265 = scmp.eq.s32.totalorder %s33, 0
      %p266 = por %p264, %p265
      %p267 = scmp.ne.s32.totalorder %s259, %s261
      %p268 = scmp.eq.s32.totalorder %s38, 1
      %p269 = por %p267, %p268
      %p270 = scmp.ne.s32.totalorder %s261, %s262
      %p271 = scmp.eq.s32.totalorder %s38, 0
      %p272 = por %p270, %p271
      %p273 = scmp.ne.s32.totalorder %s261, %s262
      %p274 = scmp.eq.s32.totalorder %s39, 1
      %p275 = por %p273, %p274
      %p277 = scmp.ne.s32.totalorder %s262, %s276
      %p278 = scmp.eq.s32.totalorder %s39, 0
      %p279 = por %p277, %p278
      %s281 = sadd.s32 %s280, 1
      %p284 = scmp.eq.s32.totalorder %s33, 1
      %p285 = scmp.ne.s32.totalorder %s280, %s282
      %p286 = scmp.eq.s32.totalorder %s33, 0
      %p287 = por %p285, %p286
      %p288 = scmp.ne.s32.totalorder %s280, %s282
      %p289 = scmp.eq.s32.totalorder %s38, 1
      %p290 = por %p288, %p289
      %p291 = scmp.ne.s32.totalorder %s282, %s283
      %p292 = scmp.eq.s32.totalorder %s38, 0
      %p293 = por %p291, %p292
      %p294 = scmp.ne.s32.totalorder %s282, %s283
      %p295 = scmp.eq.s32.totalorder %s39, 1
      %p296 = por %p294, %p295
      %p298 = scmp.ne.s32.totalorder %s283, %s297
      %p299 = scmp.eq.s32.totalorder %s39, 0
      %p300 = por %p298, %p299
      %s301 = ssub.s32 %s40, %s52
      %s302 = ssub.s32 %s41, %s48
      %s303 = sor.u32 %s301, %s302
      %p304 = scmp.eq.s32.totalorder %s303, 0
      %s306 = sadd.s32 %s305, 1
      %s307 = scalar_select %p304, %s305, %s306
      %p310 = pneg %p304
      %p311 = scmp.eq.s32.totalorder %s33, 1
      %p312 = por %p310, %p311
      %p313 = scmp.ne.s32.totalorder %s305, %s308
      %p314 = scmp.eq.s32.totalorder %s33, 0
      %p315 = por %p313, %p314
      %p316 = scmp.ne.s32.totalorder %s305, %s308
      %p317 = scmp.eq.s32.totalorder %s38, 1
      %p318 = por %p316, %p317
      %p319 = scmp.ne.s32.totalorder %s308, %s309
      %p320 = scmp.eq.s32.totalorder %s38, 0
      %p321 = por %p319, %p320
      %p322 = scmp.ne.s32.totalorder %s308, %s309
      %p323 = scmp.eq.s32.totalorder %s39, 1
      %p324 = por %p322, %p323
      %p326 = scmp.ne.s32.totalorder %s309, %s325
      %p327 = scmp.eq.s32.totalorder %s39, 0
      %p328 = por %p326, %p327
      %s329 = ssub.s32 %s40, %s52
      %s330 = ssub.s32 %s41, %s48
      %s331 = sor.u32 %s329, %s330
      %p332 = scmp.eq.s32.totalorder %s331, 0
      %s334 = sadd.s32 %s333, 1
      %s335 = scalar_select %p332, %s333, %s334
      %p338 = pneg %p332
      %p339 = scmp.eq.s32.totalorder %s33, 1
      %p340 = por %p338, %p339
      %p341 = scmp.ne.s32.totalorder %s333, %s336
      %p342 = scmp.eq.s32.totalorder %s33, 0
      %p343 = por %p341, %p342
      %p344 = scmp.ne.s32.totalorder %s333, %s336
      %p345 = scmp.eq.s32.totalorder %s38, 1
      %p346 = por %p344, %p345
      %p347 = scmp.ne.s32.totalorder %s336, %s337
      %p348 = scmp.eq.s32.totalorder %s38, 0
      %p349 = por %p347, %p348
      %p350 = scmp.ne.s32.totalorder %s336, %s337
      %p351 = scmp.eq.s32.totalorder %s39, 1
      %p352 = por %p350, %p351
      %p354 = scmp.ne.s32.totalorder %s337, %s353
      %p355 = scmp.eq.s32.totalorder %s39, 0
      %p356 = por %p354, %p355
      %p357 = scmp.le.s32.totalorder 1, %s33
      %p358 = scmp.lt.s32.totalorder %s33, 3
      %p359 = pnand %p357, %p358
      %p360 = pneg %p359
      // Predicated region
      $region9: #{tpu_custom_call.1} parent=5 // pred_check
        _
      $region10: #{tpu_custom_call.1} parent=5 // pred_check_branch
        %362 = sbr.rel (%p359) target = $region12
      $region11: #{tpu_custom_call.1} parent=5 // pred_region
        %s363 = ssub.s32 %s33, 1
        // Predicated region
        $region13: #{tpu_custom_call.1} parent=11 // pred_check
          %p364 = pneg %p146
        $region14: #{tpu_custom_call.1} parent=11 // pred_check_branch
          %366 = sbr.rel (%p364) target = $region16
        $region15: #{tpu_custom_call.1} parent=11 // pred_region
          %s368 = ssub.s32 256, 256
          %369 = vsyncadd [#allocation9], %s368
          %s370 = sshll.u32 [#allocation8], 4
          %s371 = int_to_ptr.vmem [resolvable:$true] %s370
          %376 = dma.hbm_to_vmem [thread:$0]  %s3, 256, %s371, [#allocation9], 64, 64, 4
        $region16: #{tpu_custom_call.1} parent=11 // pred_fallthru
          _
        // Predicated region
        $region17: #{tpu_custom_call.1} parent=11 // pred_check
          %p377 = pneg %p167
        $region18: #{tpu_custom_call.1} parent=11 // pred_check_branch
          %379 = sbr.rel (%p377) target = $region20
        $region19: #{tpu_custom_call.1} parent=11 // pred_region
          %s381 = ssub.s32 256, 256
          %382 = vsyncadd [#allocation9], %s381
          %s383 = sshll.u32 [#allocation10], 4
          %s384 = int_to_ptr.vmem [resolvable:$true] %s383
          %389 = dma.hbm_to_vmem [thread:$0]  %s4, 256, %s384, [#allocation9], 64, 64, 4
        $region20: #{tpu_custom_call.1} parent=11 // pred_fallthru
          _
        // Predicated region
        $region21: #{tpu_custom_call.1} parent=11 // pred_check
          %p390 = pneg %p188
        $region22: #{tpu_custom_call.1} parent=11 // pred_check_branch
          %392 = sbr.rel (%p390) target = $region24
        $region23: #{tpu_custom_call.1} parent=11 // pred_region
          %s394 = ssub.s32 256, 256
          %395 = vsyncadd [#allocation12], %s394
          %s396 = sshll.u32 [#allocation11], 4
          %s397 = int_to_ptr.vmem [resolvable:$true] %s396
          %402 = dma.hbm_to_vmem [thread:$0]  %s5, 256, %s397, [#allocation12], 64, 64, 4
        $region24: #{tpu_custom_call.1} parent=11 // pred_fallthru
          _
        // Predicated region
        $region25: #{tpu_custom_call.1} parent=11 // pred_check
          %p403 = pneg %p209
        $region26: #{tpu_custom_call.1} parent=11 // pred_check_branch
          %405 = sbr.rel (%p403) target = $region28
        $region27: #{tpu_custom_call.1} parent=11 // pred_region
          %s407 = ssub.s32 256, 256
          %408 = vsyncadd [#allocation12], %s407
          %s409 = sshll.u32 [#allocation13], 4
          %s410 = int_to_ptr.vmem [resolvable:$true] %s409
          %415 = dma.hbm_to_vmem [thread:$0]  %s6, 256, %s410, [#allocation12], 64, 64, 4
        $region28: #{tpu_custom_call.1} parent=11 // pred_fallthru
          _
        // Predicated region
        $region29: #{tpu_custom_call.1} parent=11 // pred_check
          %p416 = pneg %p230
        $region30: #{tpu_custom_call.1} parent=11 // pred_check_branch
          %418 = sbr.rel (%p416) target = $region32
        $region31: #{tpu_custom_call.1} parent=11 // pred_region
          _
        $region32: #{tpu_custom_call.1} parent=11 // pred_fallthru
          _
        // Predicated region
        $region33: #{tpu_custom_call.1} parent=11 // pred_check
          %p419 = pneg %p251
        $region34: #{tpu_custom_call.1} parent=11 // pred_check_branch
          %421 = sbr.rel (%p419) target = $region36
        $region35: #{tpu_custom_call.1} parent=11 // pred_region
          _
        $region36: #{tpu_custom_call.1} parent=11 // pred_fallthru
          _
        // Predicated region
        $region37: #{tpu_custom_call.1} parent=11 // pred_check
          %p422 = pneg %p272
        $region38: #{tpu_custom_call.1} parent=11 // pred_check_branch
          %424 = sbr.rel (%p422) target = $region40
        $region39: #{tpu_custom_call.1} parent=11 // pred_region
          _
        $region40: #{tpu_custom_call.1} parent=11 // pred_fallthru
          _
        // Predicated region
        $region41: #{tpu_custom_call.1} parent=11 // pred_check
          %p425 = pneg %p293
        $region42: #{tpu_custom_call.1} parent=11 // pred_check_branch
          %427 = sbr.rel (%p425) target = $region44
        $region43: #{tpu_custom_call.1} parent=11 // pred_region
          _
        $region44: #{tpu_custom_call.1} parent=11 // pred_fallthru
          _
      $region12: #{tpu_custom_call.1} parent=5 // pred_fallthru
        _
      %p428 = scmp.lt.s32.totalorder %s33, 2
      // Predicated region
      $region45: #{tpu_custom_call.1} parent=5 // pred_check
        %p429 = pneg %p428
      $region46: #{tpu_custom_call.1} parent=5 // pred_check_branch
        %431 = sbr.rel (%p429) target = $region48
      $region47: #{tpu_custom_call.1} parent=5 // pred_region
        // Predicated region
        $region49: #{tpu_custom_call.1} parent=47 // pred_check
          %p432 = pneg %p67
        $region50: #{tpu_custom_call.1} parent=47 // pred_check_branch
          %434 = sbr.rel (%p432) target = $region52
        $region51: #{tpu_custom_call.1} parent=47 // pred_region
          %s435 = sand.u32 %s57, 1
          %s436 = scalar_lea.sflag [#allocation3], %s435
          %s437 = sand.u32 %s57, 1
          %s438 = smul.addr %s437, 8
          %s439 = scalar_lea.vmem [#allocation2], %s438
          %s441 = ssub.s32 128, 128
          %442 = vsyncadd %s436, %s441
          %s443 = sadd.s32 %s41, %s40
          %s444 = smul.addr %s443, 128
          %s445 = scalar_lea.hbm %s0, %s444
          %s447 = sshll.u32 %s439, 4
          %s448 = int_to_ptr.vmem [resolvable:$true] %s447
          %450 = dma.hbm_to_vmem [thread:$0]  %s445, 128, %s448, %s436
        $region52: #{tpu_custom_call.1} parent=47 // pred_fallthru
          _
        // Predicated region
        $region53: #{tpu_custom_call.1} parent=47 // pred_check
          %p451 = pneg %p93
        $region54: #{tpu_custom_call.1} parent=47 // pred_check_branch
          %453 = sbr.rel (%p451) target = $region56
        $region55: #{tpu_custom_call.1} parent=47 // pred_region
          %s454 = sand.u32 %s33, 1
          %s455 = scalar_lea.sflag [#allocation6], %s454
          %s456 = sand.u32 %s83, 1
          %s457 = smul.addr %s456, 16
          %s458 = scalar_lea.vmem [#allocation5], %s457
          %s460 = ssub.s32 256, 256
          %461 = vsyncadd %s455, %s460
          %s462 = smul.addr %s40, 2
          %s463 = smul.addr %s462, 128
          %s464 = scalar_lea.hbm %s1, %s463
          %s465 = sshll.u32 %s458, 4
          %s466 = int_to_ptr.vmem [resolvable:$true] %s465
          %471 = dma.hbm_to_vmem [thread:$0]  %s464, 256, %s466, %s455, 128, 128, 8
        $region56: #{tpu_custom_call.1} parent=47 // pred_fallthru
          _
        // Predicated region
        $region57: #{tpu_custom_call.1} parent=47 // pred_check
          %p472 = pneg %p119
        $region58: #{tpu_custom_call.1} parent=47 // pred_check_branch
          %474 = sbr.rel (%p472) target = $region60
        $region59: #{tpu_custom_call.1} parent=47 // pred_region
          %s475 = sand.u32 %s33, 1
          %s476 = scalar_lea.sflag [#allocation6], %s475
          %s477 = sand.u32 %s109, 1
          %s478 = smul.addr %s477, 16
          %s479 = scalar_lea.vmem [#allocation7], %s478
          %s481 = ssub.s32 256, 256
          %482 = vsyncadd %s476, %s481
          %s483 = smul.addr %s40, 2
          %s484 = smul.addr %s483, 128
          %s485 = scalar_lea.hbm %s2, %s484
          %s486 = sshll.u32 %s479, 4
          %s487 = int_to_ptr.vmem [resolvable:$true] %s486
          %492 = dma.hbm_to_vmem [thread:$0]  %s485, 256, %s487, %s476, 128, 128, 8
        $region60: #{tpu_custom_call.1} parent=47 // pred_fallthru
          _
      $region48: #{tpu_custom_call.1} parent=5 // pred_fallthru
        _
      %p493 = scmp.le.s32.totalorder 1, %s33
      %p494 = scmp.lt.s32.totalorder %s33, 3
      %p495 = pnand %p493, %p494
      %p496 = pneg %p495
      // Predicated region
      $region61: #{tpu_custom_call.1} parent=5 // pred_check
        _
      $region62: #{tpu_custom_call.1} parent=5 // pred_check_branch
        %498 = sbr.rel (%p495) target = $region64
      $region63: #{tpu_custom_call.1} parent=5 // pred_region
        %s499 = ssub.s32 %s33, 1
        %s500 = sand.u32 %s60, 1
        %s501 = scalar_lea.sflag [#allocation3], %s500
        %s502 = sand.u32 %s60, 1
        %s503 = smul.addr %s502, 8
        %s504 = scalar_lea.vmem [#allocation2], %s503
        // Predicated region
        $region65: #{tpu_custom_call.1} parent=63 // pred_check
          %p505 = pneg %p73
        $region66: #{tpu_custom_call.1} parent=63 // pred_check_branch
          %507 = sbr.rel (%p505) target = $region68
        $region67: #{tpu_custom_call.1} parent=63 // pred_region
          %508 = dma.done %s501, 128
        $region68: #{tpu_custom_call.1} parent=63 // pred_fallthru
          _
        %s509 = sand.u32 %s38, 1
        %s510 = scalar_lea.sflag [#allocation6], %s509
        %s511 = sand.u32 %s86, 1
        %s512 = smul.addr %s511, 16
        %s513 = scalar_lea.vmem [#allocation5], %s512
        // Predicated region
        $region69: #{tpu_custom_call.1} parent=63 // pred_check
          %p514 = pneg %p99
        $region70: #{tpu_custom_call.1} parent=63 // pred_check_branch
          %516 = sbr.rel (%p514) target = $region72
        $region71: #{tpu_custom_call.1} parent=63 // pred_region
          %517 = dma.done %s510, 256
        $region72: #{tpu_custom_call.1} parent=63 // pred_fallthru
          _
        %s518 = sand.u32 %s38, 1
        %s519 = scalar_lea.sflag [#allocation6], %s518
        %s520 = sand.u32 %s112, 1
        %s521 = smul.addr %s520, 16
        %s522 = scalar_lea.vmem [#allocation7], %s521
        // Predicated region
        $region73: #{tpu_custom_call.1} parent=63 // pred_check
          %p523 = pneg %p125
        $region74: #{tpu_custom_call.1} parent=63 // pred_check_branch
          %525 = sbr.rel (%p523) target = $region76
        $region75: #{tpu_custom_call.1} parent=63 // pred_region
          %526 = dma.done %s519, 256
        $region76: #{tpu_custom_call.1} parent=63 // pred_fallthru
          _
        // Predicated region
        $region77: #{tpu_custom_call.1} parent=63 // pred_check
          %p527 = pneg %p146
        $region78: #{tpu_custom_call.1} parent=63 // pred_check_branch
          %529 = sbr.rel (%p527) target = $region80
        $region79: #{tpu_custom_call.1} parent=63 // pred_region
          %530 = dma.done [#allocation9], 256
        $region80: #{tpu_custom_call.1} parent=63 // pred_fallthru
          _
        // Predicated region
        $region81: #{tpu_custom_call.1} parent=63 // pred_check
          %p531 = pneg %p167
        $region82: #{tpu_custom_call.1} parent=63 // pred_check_branch
          %533 = sbr.rel (%p531) target = $region84
        $region83: #{tpu_custom_call.1} parent=63 // pred_region
          %534 = dma.done [#allocation9], 256
        $region84: #{tpu_custom_call.1} parent=63 // pred_fallthru
          _
        // Predicated region
        $region85: #{tpu_custom_call.1} parent=63 // pred_check
          %p535 = pneg %p188
        $region86: #{tpu_custom_call.1} parent=63 // pred_check_branch
          %537 = sbr.rel (%p535) target = $region88
        $region87: #{tpu_custom_call.1} parent=63 // pred_region
          %538 = dma.done [#allocation12], 256
        $region88: #{tpu_custom_call.1} parent=63 // pred_fallthru
          _
        // Predicated region
        $region89: #{tpu_custom_call.1} parent=63 // pred_check
          %p539 = pneg %p209
        $region90: #{tpu_custom_call.1} parent=63 // pred_check_branch
          %541 = sbr.rel (%p539) target = $region92
        $region91: #{tpu_custom_call.1} parent=63 // pred_region
          %542 = dma.done [#allocation12], 256
        $region92: #{tpu_custom_call.1} parent=63 // pred_fallthru
          _
        %s543 = sand.u32 %s60, 1
        %s544 = scalar_lea.sflag [#allocation3], %s543
        %s545 = sand.u32 %s60, 1
        %s546 = smul.addr %s545, 8
        %s547 = scalar_lea.vmem [#allocation2], %s546
        %p548 = pneg %p73
        %p549 = pneg %p70
        %s550 = sand.u32 %s38, 1
        %s551 = scalar_lea.sflag [#allocation6], %s550
        %s552 = sand.u32 %s86, 1
        %s553 = smul.addr %s552, 16
        %s554 = scalar_lea.vmem [#allocation5], %s553
        %p555 = pneg %p99
        %p556 = pneg %p96
        %s557 = sand.u32 %s38, 1
        %s558 = scalar_lea.sflag [#allocation6], %s557
        %s559 = sand.u32 %s112, 1
        %s560 = smul.addr %s559, 16
        %s561 = scalar_lea.vmem [#allocation7], %s560
        %p562 = pneg %p125
        %p563 = pneg %p122
        %p564 = pneg %p146
        %p565 = pneg %p143
        %p566 = pneg %p167
        %p567 = pneg %p164
        %p568 = pneg %p188
        %p569 = pneg %p185
        %p570 = pneg %p209
        %p571 = pneg %p206
        %p572 = pneg %p230
        %p573 = pneg %p227
        %p574 = pneg %p251
        %p575 = pneg %p248
        %p576 = pneg %p272
        %p577 = pneg %p269
        %p578 = pneg %p293
        %p579 = pneg %p290
        %p580 = pneg %p321
        %p581 = pneg %p318
        %s582 = sand.u32 %s308, 1
        %s583 = scalar_lea.sflag [#allocation4], %s582
        %s584 = sand.u32 %s308, 1
        %s585 = smul.addr %s584, 8
        %s586 = scalar_lea.vmem [#allocation14], %s585
        %p587 = pneg %p349
        %p588 = pneg %p346
        %s589 = sand.u32 %s336, 1
        %s590 = scalar_lea.sflag [#allocation16], %s589
        %s591 = sand.u32 %s336, 1
        %s592 = smul.addr %s591, 32
        %s593 = scalar_lea.vmem [#allocation15], %s592
        %v595 = vld [vmem:[%s504] sm:$0xff]
        %v596 = vpack.c.bf16 %v595, %v595
        %v597 = vld [vmem:[%s513] sm:$0xff]
        %v598 = vld [vmem:[%s513 + $0x8] sm:$0xff]
        %v599 = vpack.c.bf16 %v598, %v597
        %v600 = vld [vmem:[%s522] sm:$0xff]
        %v601 = vld [vmem:[%s522 + $0x8] sm:$0xff]
        %v602 = vpack.c.bf16 %v601, %v600
        %v603 = vld [vmem:[#allocation8] sm:$0xf]
        %v604 = vld [vmem:[#allocation8 + $0x4] sm:$0xf]
        %v605 = vld [vmem:[#allocation8 + $0x8] sm:$0xf]
        %v606 = vld [vmem:[#allocation8 + $0xc] sm:$0xf]
        %v607 = vld [vmem:[%s7] sm:$0x1]
        %v609 = vlaneseq
        %v610 = vshrl.u32 %v609, 7
        %v611 = vsub.s32 0, %v610
        %v612 = vrot.slane %v607, %v611
        %v618 = vunpack.c.l.b16 %v603
        %v619 = vunpack.c.l.b16 %v604
        %v620 = vunpack.c.l.b16 %v605
        %v621 = vunpack.c.l.b16 %v606
        %v622 = vpack.c.b16 %v619, %v618
        %v623 = vpack.c.b16 %v621, %v620
        %vm626 = vcmask 261120
        %v628 = vsel %vm626, %v596, 0
        %630 = vmatprep.subr.bf16.mxu0 0
        %631 = vmatpush1.bf16.msra.mxu0 0
        %632 = vmatprep.subr.bf16.mxu0 0
        %633 = vmatpush1.bf16.msra.mxu0 0
        %634 = vmatprep.subr.bf16.mxu0 0
        %635 = vmatpush1.bf16.msra.mxu0 0
        %636 = vmatprep.subr.bf16.mxu0 0
        %637 = vmatpush1.bf16.msra.mxu0 0
        %638 = vmatprep.subr.bf16.mxu0 0
        %639 = vmatpush1.bf16.msra.mxu0 0
        %640 = vmatprep.subr.bf16.mxu0 0
        %641 = vmatpush1.bf16.msra.mxu0 0
        %642 = vmatprep.subr.bf16.mxu0 0
        %643 = vmatpush1.bf16.msra.mxu0 %v623
        %644 = vmatprep.subr.bf16.mxu0 0
        %645 = vmatpush1.bf16.msra.mxu0 %v622
        %646 = vmatprep.subr.bf16.mxu0 0
        %647 = vmatpush2.bf16.msra.mxu0 0
        %648 = vmatprep.subr.bf16.mxu0 0
        %649 = vmatpush2.bf16.msra.mxu0 0
        %650 = vmatprep.subr.bf16.mxu0 0
        %651 = vmatpush2.bf16.msra.mxu0 0
        %652 = vmatprep.subr.bf16.mxu0 0
        %653 = vmatpush2.bf16.msra.mxu0 0
        %654 = vmatprep.subr.bf16.mxu0 0
        %655 = vmatpush2.bf16.msra.mxu0 0
        %656 = vmatprep.subr.bf16.mxu0 0
        %657 = vmatpush2.bf16.msra.mxu0 0
        %658 = vmatprep.subr.bf16.mxu0 0
        %659 = vmatpush2.bf16.msra.mxu0 0
        %660 = vmatprep.subr.bf16.mxu0 0
        %661 = vmatpush2.bf16.msra.mxu0 0
        %662 = vmatprep.mubr.bf16.mxu0 0
        %663 = vmatmul.mubr.bf16.gmra.mxu0 %v628
        %v664 = vpop.f32.mrf.mxu0
        %v665 = vadd.f32 %v612, %v664
        %v666 = vpop.f32.mrf.mxu0
        %v667 = vpop.f32.mrf.mxu0
        %v668 = vpop.f32.mrf.mxu0
        %669 = vdwg.mxu0
        %v670 = vld [vmem:[#allocation10] sm:$0xf]
        %v671 = vld [vmem:[#allocation10 + $0x4] sm:$0xf]
        %v672 = vld [vmem:[#allocation10 + $0x8] sm:$0xf]
        %v673 = vld [vmem:[#allocation10 + $0xc] sm:$0xf]
        %v674 = vld [vmem:[%s8] sm:$0x1]
        %v676 = vlaneseq
        %v677 = vshrl.u32 %v676, 7
        %v678 = vsub.s32 0, %v677
        %v679 = vrot.slane %v674, %v678
        %v685 = vunpack.c.l.b16 %v670
        %v686 = vunpack.c.l.b16 %v671
        %v687 = vunpack.c.l.b16 %v672
        %v688 = vunpack.c.l.b16 %v673
        %v689 = vpack.c.b16 %v686, %v685
        %v690 = vpack.c.b16 %v688, %v687
        %v694 = vsel %vm626, %v599, 0
        %696 = vmatprep.subr.bf16.mxu0 0
        %697 = vmatpush1.bf16.msra.mxu0 0
        %698 = vmatprep.subr.bf16.mxu0 0
        %699 = vmatpush1.bf16.msra.mxu0 0
        %700 = vmatprep.subr.bf16.mxu0 0
        %701 = vmatpush1.bf16.msra.mxu0 0
        %702 = vmatprep.subr.bf16.mxu0 0
        %703 = vmatpush1.bf16.msra.mxu0 0
        %704 = vmatprep.subr.bf16.mxu0 0
        %705 = vmatpush1.bf16.msra.mxu0 0
        %706 = vmatprep.subr.bf16.mxu0 0
        %707 = vmatpush1.bf16.msra.mxu0 0
        %708 = vmatprep.subr.bf16.mxu0 0
        %709 = vmatpush1.bf16.msra.mxu0 %v690
        %710 = vmatprep.subr.bf16.mxu0 0
        %711 = vmatpush1.bf16.msra.mxu0 %v689
        %712 = vmatprep.subr.bf16.mxu0 0
        %713 = vmatpush2.bf16.msra.mxu0 0
        %714 = vmatprep.subr.bf16.mxu0 0
        %715 = vmatpush2.bf16.msra.mxu0 0
        %716 = vmatprep.subr.bf16.mxu0 0
        %717 = vmatpush2.bf16.msra.mxu0 0
        %718 = vmatprep.subr.bf16.mxu0 0
        %719 = vmatpush2.bf16.msra.mxu0 0
        %720 = vmatprep.subr.bf16.mxu0 0
        %721 = vmatpush2.bf16.msra.mxu0 0
        %722 = vmatprep.subr.bf16.mxu0 0
        %723 = vmatpush2.bf16.msra.mxu0 0
        %724 = vmatprep.subr.bf16.mxu0 0
        %725 = vmatpush2.bf16.msra.mxu0 0
        %726 = vmatprep.subr.bf16.mxu0 0
        %727 = vmatpush2.bf16.msra.mxu0 0
        %728 = vmatprep.mubr.bf16.mxu0 0
        %729 = vmatmul.mubr.bf16.gmra.mxu0 %v694
        %v730 = vpop.f32.mrf.mxu0
        %v731 = vadd.f32 %v679, %v730
        %v732 = vpop.f32.mrf.mxu0
        %v733 = vpop.f32.mrf.mxu0
        %v734 = vadd.f32 %v679, %v733
        %v735 = vpop.f32.mrf.mxu0
        %736 = vdwg.mxu0
        %v737 = vld [vmem:[#allocation11] sm:$0xf]
        %v738 = vld [vmem:[#allocation11 + $0x4] sm:$0xf]
        %v739 = vld [vmem:[#allocation11 + $0x8] sm:$0xf]
        %v740 = vld [vmem:[#allocation11 + $0xc] sm:$0xf]
        %v741 = vld [vmem:[%s9] sm:$0x1]
        %v743 = vlaneseq
        %v744 = vshrl.u32 %v743, 7
        %v745 = vsub.s32 0, %v744
        %v746 = vrot.slane %v741, %v745
        %v752 = vunpack.c.l.b16 %v737
        %v753 = vunpack.c.l.b16 %v738
        %v754 = vunpack.c.l.b16 %v739
        %v755 = vunpack.c.l.b16 %v740
        %v756 = vpack.c.b16 %v753, %v752
        %v757 = vpack.c.b16 %v755, %v754
        %v761 = vsel %vm626, %v602, 0
        %763 = vmatprep.subr.bf16.mxu0 0
        %764 = vmatpush1.bf16.msra.mxu0 0
        %765 = vmatprep.subr.bf16.mxu0 0
        %766 = vmatpush1.bf16.msra.mxu0 0
        %767 = vmatprep.subr.bf16.mxu0 0
        %768 = vmatpush1.bf16.msra.mxu0 0
        %769 = vmatprep.subr.bf16.mxu0 0
        %770 = vmatpush1.bf16.msra.mxu0 0
        %771 = vmatprep.subr.bf16.mxu0 0
        %772 = vmatpush1.bf16.msra.mxu0 0
        %773 = vmatprep.subr.bf16.mxu0 0
        %774 = vmatpush1.bf16.msra.mxu0 0
        %775 = vmatprep.subr.bf16.mxu0 0
        %776 = vmatpush1.bf16.msra.mxu0 %v757
        %777 = vmatprep.subr.bf16.mxu0 0
        %778 = vmatpush1.bf16.msra.mxu0 %v756
        %779 = vmatprep.subr.bf16.mxu0 0
        %780 = vmatpush2.bf16.msra.mxu0 0
        %781 = vmatprep.subr.bf16.mxu0 0
        %782 = vmatpush2.bf16.msra.mxu0 0
        %783 = vmatprep.subr.bf16.mxu0 0
        %784 = vmatpush2.bf16.msra.mxu0 0
        %785 = vmatprep.subr.bf16.mxu0 0
        %786 = vmatpush2.bf16.msra.mxu0 0
        %787 = vmatprep.subr.bf16.mxu0 0
        %788 = vmatpush2.bf16.msra.mxu0 0
        %789 = vmatprep.subr.bf16.mxu0 0
        %790 = vmatpush2.bf16.msra.mxu0 0
        %791 = vmatprep.subr.bf16.mxu0 0
        %792 = vmatpush2.bf16.msra.mxu0 0
        %793 = vmatprep.subr.bf16.mxu0 0
        %794 = vmatpush2.bf16.msra.mxu0 0
        %795 = vmatprep.mubr.bf16.mxu0 0
        %796 = vmatmul.mubr.bf16.gmra.mxu0 %v761
        %v797 = vpop.f32.mrf.mxu0
        %v798 = vadd.f32 %v746, %v797
        %v799 = vpop.f32.mrf.mxu0
        %v800 = vpop.f32.mrf.mxu0
        %v801 = vadd.f32 %v746, %v800
        %v802 = vpop.f32.mrf.mxu0
        %803 = vdwg.mxu0
        %v804 = vpack.c.bf16 %v665, %v665
        %v805 = vpack.c.bf16 %v734, %v731
        %v806 = vpack.c.bf16 %v801, %v798
        %vm807 = vcmask 64512
        %v809 = vsel %vm807, %v804, 0
        %v812 = vsel %vm807, %v805, 0
        %814 = vmatprep.subr.bf16.mxu0 0
        %815 = vmatpush1.bf16.xpose.msra.mxu0 0
        %816 = vmatprep.subr.bf16.mxu0 0
        %817 = vmatpush1.bf16.xpose.msra.mxu0 0
        %818 = vmatprep.subr.bf16.mxu0 0
        %819 = vmatpush1.bf16.xpose.msra.mxu0 0
        %820 = vmatprep.subr.bf16.mxu0 0
        %821 = vmatpush1.bf16.xpose.msra.mxu0 0
        %822 = vmatprep.subr.bf16.mxu0 0
        %823 = vmatpush1.bf16.xpose.msra.mxu0 0
        %824 = vmatprep.subr.bf16.mxu0 0
        %825 = vmatpush1.bf16.xpose.msra.mxu0 0
        %826 = vmatprep.subr.bf16.mxu0 0
        %827 = vmatpush1.bf16.xpose.msra.mxu0 0
        %828 = vmatprep.subr.bf16.mxu0 0
        %829 = vmatpush1.bf16.xpose.msra.mxu0 %v812
        %830 = vmatprep.subr.bf16.mxu0 0
        %831 = vmatpush2.bf16.xpose.msra.mxu0 0
        %832 = vmatprep.subr.bf16.mxu0 0
        %833 = vmatpush2.bf16.xpose.msra.mxu0 0
        %834 = vmatprep.subr.bf16.mxu0 0
        %835 = vmatpush2.bf16.xpose.msra.mxu0 0
        %836 = vmatprep.subr.bf16.mxu0 0
        %837 = vmatpush2.bf16.xpose.msra.mxu0 0
        %838 = vmatprep.subr.bf16.mxu0 0
        %839 = vmatpush2.bf16.xpose.msra.mxu0 0
        %840 = vmatprep.subr.bf16.mxu0 0
        %841 = vmatpush2.bf16.xpose.msra.mxu0 0
        %842 = vmatprep.subr.bf16.mxu0 0
        %843 = vmatpush2.bf16.xpose.msra.mxu0 0
        %844 = vmatprep.subr.bf16.mxu0 0
        %845 = vmatpush2.bf16.xpose.msra.mxu0 0
        %846 = vmatprep.mubr.bf16.mxu0 0
        %847 = vmatmul.mubr.bf16.gmra.mxu0 %v809
        %v848 = vpop.f32.mrf.mxu0
        %v849 = vadd.f32 0.0, %v848
        %v850 = vpop.f32.mrf.mxu0
        %v851 = vpop.f32.mrf.mxu0
        %v852 = vpop.f32.mrf.mxu0
        %853 = vdwg.mxu0
        %v854 = vmul.f32 %v849, 0.35355338
        %vm855 = vcmask 130048
        %v856 = vsel %vm855, %v854, -inf
        %857 = vmax.xlane.f32.xlu0 %v856
        %v858 = vpop.xlane.xlu0 %857
        %v859 = vsub.f32 %v854, %v858
        %v860 = vmul.f32 %v859, 1.442695
        %v861 = vpow.pop %v860
        %v862 = vsel %vm855, %v861, 0.0
        %863 = vadd.xlane.f32.xlu0 %v862
        %v864 = vpop.xlane.xlu0 %863
        %v865 = vrcp.pop %v864
        %v866 = vmul.f32 %v861, %v865
        %867 = vst.msk [vmem:[%s593] sm:$0xff] %vm855, %v866
        %v868 = vpack.c.bf16 %v866, %v866
        %v870 = vsel %vm855, %v868, 0
        %872 = vmatprep.subr.bf16.mxu0 0
        %873 = vmatpush1.bf16.msra.mxu0 0
        %874 = vmatprep.subr.bf16.mxu0 0
        %875 = vmatpush1.bf16.msra.mxu0 0
        %876 = vmatprep.subr.bf16.mxu0 0
        %877 = vmatpush1.bf16.msra.mxu0 0
        %878 = vmatprep.subr.bf16.mxu0 0
        %879 = vmatpush1.bf16.msra.mxu0 0
        %880 = vmatprep.subr.bf16.mxu0 0
        %881 = vmatpush1.bf16.msra.mxu0 0
        %882 = vmatprep.subr.bf16.mxu0 0
        %883 = vmatpush1.bf16.msra.mxu0 0
        %884 = vmatprep.subr.bf16.mxu0 0
        %885 = vmatpush1.bf16.msra.mxu0 0
        %886 = vmatprep.subr.bf16.mxu0 0
        %887 = vmatpush1.bf16.msra.mxu0 %v806
        %888 = vmatprep.subr.bf16.mxu0 0
        %889 = vmatpush2.bf16.msra.mxu0 0
        %890 = vmatprep.subr.bf16.mxu0 0
        %891 = vmatpush2.bf16.msra.mxu0 0
        %892 = vmatprep.subr.bf16.mxu0 0
        %893 = vmatpush2.bf16.msra.mxu0 0
        %894 = vmatprep.subr.bf16.mxu0 0
        %895 = vmatpush2.bf16.msra.mxu0 0
        %896 = vmatprep.subr.bf16.mxu0 0
        %897 = vmatpush2.bf16.msra.mxu0 0
        %898 = vmatprep.subr.bf16.mxu0 0
        %899 = vmatpush2.bf16.msra.mxu0 0
        %900 = vmatprep.subr.bf16.mxu0 0
        %901 = vmatpush2.bf16.msra.mxu0 0
        %902 = vmatprep.subr.bf16.mxu0 0
        %903 = vmatpush2.bf16.msra.mxu0 0
        %904 = vmatprep.mubr.bf16.mxu0 0
        %905 = vmatmul.mubr.bf16.gmra.mxu0 %v870
        %v906 = vpop.f32.mrf.mxu0
        %v907 = vadd.f32 0.0, %v906
        %v908 = vpop.f32.mrf.mxu0
        %v909 = vpop.f32.mrf.mxu0
        %v910 = vpop.f32.mrf.mxu0
        %911 = vdwg.mxu0
        %913 = vrot.lane.b32.xlu0 %v804, 120
        %v914 = vpop.permute.xlu0 %913
        %916 = vrot.lane.b32.xlu0 %v805, 120
        %v917 = vpop.permute.xlu0 %916
        %v919 = vsel %vm807, %v914, 0
        %v922 = vsel %vm807, %v917, 0
        %924 = vmatprep.subr.bf16.mxu0 0
        %925 = vmatpush1.bf16.xpose.msra.mxu0 0
        %926 = vmatprep.subr.bf16.mxu0 0
        %927 = vmatpush1.bf16.xpose.msra.mxu0 0
        %928 = vmatprep.subr.bf16.mxu0 0
        %929 = vmatpush1.bf16.xpose.msra.mxu0 0
        %930 = vmatprep.subr.bf16.mxu0 0
        %931 = vmatpush1.bf16.xpose.msra.mxu0 0
        %932 = vmatprep.subr.bf16.mxu0 0
        %933 = vmatpush1.bf16.xpose.msra.mxu0 0
        %934 = vmatprep.subr.bf16.mxu0 0
        %935 = vmatpush1.bf16.xpose.msra.mxu0 0
        %936 = vmatprep.subr.bf16.mxu0 0
        %937 = vmatpush1.bf16.xpose.msra.mxu0 0
        %938 = vmatprep.subr.bf16.mxu0 0
        %939 = vmatpush1.bf16.xpose.msra.mxu0 %v922
        %940 = vmatprep.subr.bf16.mxu0 0
        %941 = vmatpush2.bf16.xpose.msra.mxu0 0
        %942 = vmatprep.subr.bf16.mxu0 0
        %943 = vmatpush2.bf16.xpose.msra.mxu0 0
        %944 = vmatprep.subr.bf16.mxu0 0
        %945 = vmatpush2.bf16.xpose.msra.mxu0 0
        %946 = vmatprep.subr.bf16.mxu0 0
        %947 = vmatpush2.bf16.xpose.msra.mxu0 0
        %948 = vmatprep.subr.bf16.mxu0 0
        %949 = vmatpush2.bf16.xpose.msra.mxu0 0
        %950 = vmatprep.subr.bf16.mxu0 0
        %951 = vmatpush2.bf16.xpose.msra.mxu0 0
        %952 = vmatprep.subr.bf16.mxu0 0
        %953 = vmatpush2.bf16.xpose.msra.mxu0 0
        %954 = vmatprep.subr.bf16.mxu0 0
        %955 = vmatpush2.bf16.xpose.msra.mxu0 0
        %956 = vmatprep.mubr.bf16.mxu0 0
        %957 = vmatmul.mubr.bf16.gmra.mxu0 %v919
        %v958 = vpop.f32.mrf.mxu0
        %v959 = vadd.f32 0.0, %v958
        %v960 = vpop.f32.mrf.mxu0
        %v961 = vpop.f32.mrf.mxu0
        %v962 = vpop.f32.mrf.mxu0
        %963 = vdwg.mxu0
        %v964 = vmul.f32 %v959, 0.35355338
        %v965 = vsel %vm855, %v964, -inf
        %966 = vmax.xlane.f32.xlu0 %v965
        %v967 = vpop.xlane.xlu0 %966
        %v968 = vsub.f32 %v964, %v967
        %v969 = vmul.f32 %v968, 1.442695
        %v970 = vpow.pop %v969
        %v971 = vsel %vm855, %v970, 0.0
        %972 = vadd.xlane.f32.xlu0 %v971
        %v973 = vpop.xlane.xlu0 %972
        %v974 = vrcp.pop %v973
        %v975 = vmul.f32 %v970, %v974
        %s976 = scalar_lea.vmem %s593, 8 [#allocation15]
        %977 = vst.msk [vmem:[%s976] sm:$0xff] %vm855, %v975
        %v978 = vpack.c.bf16 %v975, %v975
        %980 = vrot.lane.b32.xlu0 %v806, 120
        %v981 = vpop.permute.xlu0 %980
        %v984 = vsel %vm855, %v978, 0
        %986 = vmatprep.subr.bf16.mxu0 0
        %987 = vmatpush1.bf16.msra.mxu0 0
        %988 = vmatprep.subr.bf16.mxu0 0
        %989 = vmatpush1.bf16.msra.mxu0 0
        %990 = vmatprep.subr.bf16.mxu0 0
        %991 = vmatpush1.bf16.msra.mxu0 0
        %992 = vmatprep.subr.bf16.mxu0 0
        %993 = vmatpush1.bf16.msra.mxu0 0
        %994 = vmatprep.subr.bf16.mxu0 0
        %995 = vmatpush1.bf16.msra.mxu0 0
        %996 = vmatprep.subr.bf16.mxu0 0
        %997 = vmatpush1.bf16.msra.mxu0 0
        %998 = vmatprep.subr.bf16.mxu0 0
        %999 = vmatpush1.bf16.msra.mxu0 0
        %1000 = vmatprep.subr.bf16.mxu0 0
        %1001 = vmatpush1.bf16.msra.mxu0 %v981
        %1002 = vmatprep.subr.bf16.mxu0 0
        %1003 = vmatpush2.bf16.msra.mxu0 0
        %1004 = vmatprep.subr.bf16.mxu0 0
        %1005 = vmatpush2.bf16.msra.mxu0 0
        %1006 = vmatprep.subr.bf16.mxu0 0
        %1007 = vmatpush2.bf16.msra.mxu0 0
        %1008 = vmatprep.subr.bf16.mxu0 0
        %1009 = vmatpush2.bf16.msra.mxu0 0
        %1010 = vmatprep.subr.bf16.mxu0 0
        %1011 = vmatpush2.bf16.msra.mxu0 0
        %1012 = vmatprep.subr.bf16.mxu0 0
        %1013 = vmatpush2.bf16.msra.mxu0 0
        %1014 = vmatprep.subr.bf16.mxu0 0
        %1015 = vmatpush2.bf16.msra.mxu0 0
        %1016 = vmatprep.subr.bf16.mxu0 0
        %1017 = vmatpush2.bf16.msra.mxu0 0
        %1018 = vmatprep.mubr.bf16.mxu0 0
        %1019 = vmatmul.mubr.bf16.gmra.mxu0 %v984
        %v1020 = vpop.f32.mrf.mxu0
        %v1021 = vadd.f32 0.0, %v1020
        %v1022 = vpop.f32.mrf.mxu0
        %v1023 = vpop.f32.mrf.mxu0
        %v1024 = vpop.f32.mrf.mxu0
        %1025 = vdwg.mxu0
        %1026 = vrot.lane.b32.xlu0 %v804, 112
        %v1027 = vpop.permute.xlu0 %1026
        %1028 = vrot.lane.b32.xlu0 %v805, 112
        %v1029 = vpop.permute.xlu0 %1028
        %v1031 = vsel %vm807, %v1027, 0
        %v1034 = vsel %vm807, %v1029, 0
        %1036 = vmatprep.subr.bf16.mxu0 0
        %1037 = vmatpush1.bf16.xpose.msra.mxu0 0
        %1038 = vmatprep.subr.bf16.mxu0 0
        %1039 = vmatpush1.bf16.xpose.msra.mxu0 0
        %1040 = vmatprep.subr.bf16.mxu0 0
        %1041 = vmatpush1.bf16.xpose.msra.mxu0 0
        %1042 = vmatprep.subr.bf16.mxu0 0
        %1043 = vmatpush1.bf16.xpose.msra.mxu0 0
        %1044 = vmatprep.subr.bf16.mxu0 0
        %1045 = vmatpush1.bf16.xpose.msra.mxu0 0
        %1046 = vmatprep.subr.bf16.mxu0 0
        %1047 = vmatpush1.bf16.xpose.msra.mxu0 0
        %1048 = vmatprep.subr.bf16.mxu0 0
        %1049 = vmatpush1.bf16.xpose.msra.mxu0 0
        %1050 = vmatprep.subr.bf16.mxu0 0
        %1051 = vmatpush1.bf16.xpose.msra.mxu0 %v1034
        %1052 = vmatprep.subr.bf16.mxu0 0
        %1053 = vmatpush2.bf16.xpose.msra.mxu0 0
        %1054 = vmatprep.subr.bf16.mxu0 0
        %1055 = vmatpush2.bf16.xpose.msra.mxu0 0
        %1056 = vmatprep.subr.bf16.mxu0 0
        %1057 = vmatpush2.bf16.xpose.msra.mxu0 0
        %1058 = vmatprep.subr.bf16.mxu0 0
        %1059 = vmatpush2.bf16.xpose.msra.mxu0 0
        %1060 = vmatprep.subr.bf16.mxu0 0
        %1061 = vmatpush2.bf16.xpose.msra.mxu0 0
        %1062 = vmatprep.subr.bf16.mxu0 0
        %1063 = vmatpush2.bf16.xpose.msra.mxu0 0
        %1064 = vmatprep.subr.bf16.mxu0 0
        %1065 = vmatpush2.bf16.xpose.msra.mxu0 0
        %1066 = vmatprep.subr.bf16.mxu0 0
        %1067 = vmatpush2.bf16.xpose.msra.mxu0 0
        %1068 = vmatprep.mubr.bf16.mxu0 0
        %1069 = vmatmul.mubr.bf16.gmra.mxu0 %v1031
        %v1070 = vpop.f32.mrf.mxu0
        %v1071 = vadd.f32 0.0, %v1070
        %v1072 = vpop.f32.mrf.mxu0
        %v1073 = vpop.f32.mrf.mxu0
        %v1074 = vpop.f32.mrf.mxu0
        %1075 = vdwg.mxu0
        %v1076 = vmul.f32 %v1071, 0.35355338
        %v1077 = vsel %vm855, %v1076, -inf
        %1078 = vmax.xlane.f32.xlu0 %v1077
        %v1079 = vpop.xlane.xlu0 %1078
        %v1080 = vsub.f32 %v1076, %v1079
        %v1081 = vmul.f32 %v1080, 1.442695
        %v1082 = vpow.pop %v1081
        %v1083 = vsel %vm855, %v1082, 0.0
        %1084 = vadd.xlane.f32.xlu0 %v1083
        %v1085 = vpop.xlane.xlu0 %1084
        %v1086 = vrcp.pop %v1085
        %v1087 = vmul.f32 %v1082, %v1086
        %s1088 = scalar_lea.vmem %s593, 16 [#allocation15]
        %1089 = vst.msk [vmem:[%s1088] sm:$0xff] %vm855, %v1087
        %v1090 = vpack.c.bf16 %v1087, %v1087
        %1091 = vrot.lane.b32.xlu0 %v806, 112
        %v1092 = vpop.permute.xlu0 %1091
        %v1095 = vsel %vm855, %v1090, 0
        %1097 = vmatprep.subr.bf16.mxu0 0
        %1098 = vmatpush1.bf16.msra.mxu0 0
        %1099 = vmatprep.subr.bf16.mxu0 0
        %1100 = vmatpush1.bf16.msra.mxu0 0
        %1101 = vmatprep.subr.bf16.mxu0 0
        %1102 = vmatpush1.bf16.msra.mxu0 0
        %1103 = vmatprep.subr.bf16.mxu0 0
        %1104 = vmatpush1.bf16.msra.mxu0 0
        %1105 = vmatprep.subr.bf16.mxu0 0
        %1106 = vmatpush1.bf16.msra.mxu0 0
        %1107 = vmatprep.subr.bf16.mxu0 0
        %1108 = vmatpush1.bf16.msra.mxu0 0
        %1109 = vmatprep.subr.bf16.mxu0 0
        %1110 = vmatpush1.bf16.msra.mxu0 0
        %1111 = vmatprep.subr.bf16.mxu0 0
        %1112 = vmatpush1.bf16.msra.mxu0 %v1092
        %1113 = vmatprep.subr.bf16.mxu0 0
        %1114 = vmatpush2.bf16.msra.mxu0 0
        %1115 = vmatprep.subr.bf16.mxu0 0
        %1116 = vmatpush2.bf16.msra.mxu0 0
        %1117 = vmatprep.subr.bf16.mxu0 0
        %1118 = vmatpush2.bf16.msra.mxu0 0
        %1119 = vmatprep.subr.bf16.mxu0 0
        %1120 = vmatpush2.bf16.msra.mxu0 0
        %1121 = vmatprep.subr.bf16.mxu0 0
        %1122 = vmatpush2.bf16.msra.mxu0 0
        %1123 = vmatprep.subr.bf16.mxu0 0
        %1124 = vmatpush2.bf16.msra.mxu0 0
        %1125 = vmatprep.subr.bf16.mxu0 0
        %1126 = vmatpush2.bf16.msra.mxu0 0
        %1127 = vmatprep.subr.bf16.mxu0 0
        %1128 = vmatpush2.bf16.msra.mxu0 0
        %1129 = vmatprep.mubr.bf16.mxu0 0
        %1130 = vmatmul.mubr.bf16.gmra.mxu0 %v1095
        %v1131 = vpop.f32.mrf.mxu0
        %v1132 = vadd.f32 0.0, %v1131
        %v1133 = vpop.f32.mrf.mxu0
        %v1134 = vpop.f32.mrf.mxu0
        %v1135 = vpop.f32.mrf.mxu0
        %1136 = vdwg.mxu0
        %1137 = vrot.lane.b32.xlu0 %v804, 104
        %v1138 = vpop.permute.xlu0 %1137
        %1139 = vrot.lane.b32.xlu0 %v805, 104
        %v1140 = vpop.permute.xlu0 %1139
        %v1142 = vsel %vm807, %v1138, 0
        %v1145 = vsel %vm807, %v1140, 0
        %1147 = vmatprep.subr.bf16.mxu0 0
        %1148 = vmatpush1.bf16.xpose.msra.mxu0 0
        %1149 = vmatprep.subr.bf16.mxu0 0
        %1150 = vmatpush1.bf16.xpose.msra.mxu0 0
        %1151 = vmatprep.subr.bf16.mxu0 0
        %1152 = vmatpush1.bf16.xpose.msra.mxu0 0
        %1153 = vmatprep.subr.bf16.mxu0 0
        %1154 = vmatpush1.bf16.xpose.msra.mxu0 0
        %1155 = vmatprep.subr.bf16.mxu0 0
        %1156 = vmatpush1.bf16.xpose.msra.mxu0 0
        %1157 = vmatprep.subr.bf16.mxu0 0
        %1158 = vmatpush1.bf16.xpose.msra.mxu0 0
        %1159 = vmatprep.subr.bf16.mxu0 0
        %1160 = vmatpush1.bf16.xpose.msra.mxu0 0
        %1161 = vmatprep.subr.bf16.mxu0 0
        %1162 = vmatpush1.bf16.xpose.msra.mxu0 %v1145
        %1163 = vmatprep.subr.bf16.mxu0 0
        %1164 = vmatpush2.bf16.xpose.msra.mxu0 0
        %1165 = vmatprep.subr.bf16.mxu0 0
        %1166 = vmatpush2.bf16.xpose.msra.mxu0 0
        %1167 = vmatprep.subr.bf16.mxu0 0
        %1168 = vmatpush2.bf16.xpose.msra.mxu0 0
        %1169 = vmatprep.subr.bf16.mxu0 0
        %1170 = vmatpush2.bf16.xpose.msra.mxu0 0
        %1171 = vmatprep.subr.bf16.mxu0 0
        %1172 = vmatpush2.bf16.xpose.msra.mxu0 0
        %1173 = vmatprep.subr.bf16.mxu0 0
        %1174 = vmatpush2.bf16.xpose.msra.mxu0 0
        %1175 = vmatprep.subr.bf16.mxu0 0
        %1176 = vmatpush2.bf16.xpose.msra.mxu0 0
        %1177 = vmatprep.subr.bf16.mxu0 0
        %1178 = vmatpush2.bf16.xpose.msra.mxu0 0
        %1179 = vmatprep.mubr.bf16.mxu0 0
        %1180 = vmatmul.mubr.bf16.gmra.mxu0 %v1142
        %v1181 = vpop.f32.mrf.mxu0
        %v1182 = vadd.f32 0.0, %v1181
        %v1183 = vpop.f32.mrf.mxu0
        %v1184 = vpop.f32.mrf.mxu0
        %v1185 = vpop.f32.mrf.mxu0
        %1186 = vdwg.mxu0
        %v1187 = vmul.f32 %v1182, 0.35355338
        %v1188 = vsel %vm855, %v1187, -inf
        %1189 = vmax.xlane.f32.xlu0 %v1188
        %v1190 = vpop.xlane.xlu0 %1189
        %v1191 = vsub.f32 %v1187, %v1190
        %v1192 = vmul.f32 %v1191, 1.442695
        %v1193 = vpow.pop %v1192
        %v1194 = vsel %vm855, %v1193, 0.0
        %1195 = vadd.xlane.f32.xlu0 %v1194
        %v1196 = vpop.xlane.xlu0 %1195
        %v1197 = vrcp.pop %v1196
        %v1198 = vmul.f32 %v1193, %v1197
        %s1199 = scalar_lea.vmem %s593, 24 [#allocation15]
        %1200 = vst.msk [vmem:[%s1199] sm:$0xff] %vm855, %v1198
        %v1201 = vpack.c.bf16 %v1198, %v1198
        %1202 = vrot.lane.b32.xlu0 %v806, 104
        %v1203 = vpop.permute.xlu0 %1202
        %v1206 = vsel %vm855, %v1201, 0
        %1208 = vmatprep.subr.bf16.mxu0 0
        %1209 = vmatpush1.bf16.msra.mxu0 0
        %1210 = vmatprep.subr.bf16.mxu0 0
        %1211 = vmatpush1.bf16.msra.mxu0 0
        %1212 = vmatprep.subr.bf16.mxu0 0
        %1213 = vmatpush1.bf16.msra.mxu0 0
        %1214 = vmatprep.subr.bf16.mxu0 0
        %1215 = vmatpush1.bf16.msra.mxu0 0
        %1216 = vmatprep.subr.bf16.mxu0 0
        %1217 = vmatpush1.bf16.msra.mxu0 0
        %1218 = vmatprep.subr.bf16.mxu0 0
        %1219 = vmatpush1.bf16.msra.mxu0 0
        %1220 = vmatprep.subr.bf16.mxu0 0
        %1221 = vmatpush1.bf16.msra.mxu0 0
        %1222 = vmatprep.subr.bf16.mxu0 0
        %1223 = vmatpush1.bf16.msra.mxu0 %v1203
        %1224 = vmatprep.subr.bf16.mxu0 0
        %1225 = vmatpush2.bf16.msra.mxu0 0
        %1226 = vmatprep.subr.bf16.mxu0 0
        %1227 = vmatpush2.bf16.msra.mxu0 0
        %1228 = vmatprep.subr.bf16.mxu0 0
        %1229 = vmatpush2.bf16.msra.mxu0 0
        %1230 = vmatprep.subr.bf16.mxu0 0
        %1231 = vmatpush2.bf16.msra.mxu0 0
        %1232 = vmatprep.subr.bf16.mxu0 0
        %1233 = vmatpush2.bf16.msra.mxu0 0
        %1234 = vmatprep.subr.bf16.mxu0 0
        %1235 = vmatpush2.bf16.msra.mxu0 0
        %1236 = vmatprep.subr.bf16.mxu0 0
        %1237 = vmatpush2.bf16.msra.mxu0 0
        %1238 = vmatprep.subr.bf16.mxu0 0
        %1239 = vmatpush2.bf16.msra.mxu0 0
        %1240 = vmatprep.mubr.bf16.mxu0 0
        %1241 = vmatmul.mubr.bf16.gmra.mxu0 %v1206
        %v1242 = vpop.f32.mrf.mxu0
        %v1243 = vadd.f32 0.0, %v1242
        %v1244 = vpop.f32.mrf.mxu0
        %v1245 = vpop.f32.mrf.mxu0
        %v1246 = vpop.f32.mrf.mxu0
        %1247 = vdwg.mxu0
        %1249 = vrot.lane.b32.xlu0 %v1021, 8
        %v1250 = vpop.permute.xlu0 %1249
        %1253 = vrot.lane.b32.xlu0 %v1132, 16
        %v1254 = vpop.permute.xlu0 %1253
        %1257 = vrot.lane.b32.xlu0 %v1243, 24
        %v1258 = vpop.permute.xlu0 %1257
        %v1260 = vsel %vm807, %v907, %v1250
        %v1261 = vsel %vm855, %v1260, %v1254
        %vm1262 = vcmask 195584
        %v1263 = vsel %vm1262, %v1261, %v1258
        %v1264 = vpack.c.bf16 %v1263, %v1263
        %v1265 = vld [vmem:[#allocation13] sm:$0xf]
        %v1266 = vld [vmem:[#allocation13 + $0x4] sm:$0xf]
        %v1267 = vld [vmem:[#allocation13 + $0x8] sm:$0xf]
        %v1268 = vld [vmem:[#allocation13 + $0xc] sm:$0xf]
        %v1269 = vld [vmem:[%s10] sm:$0x1]
        %v1271 = vlaneseq
        %v1272 = vshrl.u32 %v1271, 7
        %v1273 = vsub.s32 0, %v1272
        %v1274 = vrot.slane %v1269, %v1273
        %v1280 = vunpack.c.l.b16 %v1265
        %v1281 = vunpack.c.l.b16 %v1266
        %v1282 = vunpack.c.l.b16 %v1267
        %v1283 = vunpack.c.l.b16 %v1268
        %v1284 = vpack.c.b16 %v1281, %v1280
        %v1285 = vpack.c.b16 %v1283, %v1282
        %v1289 = vsel %vm626, %v1264, 0
        %1291 = vmatprep.subr.bf16.mxu0 0
        %1292 = vmatpush1.bf16.msra.mxu0 0
        %1293 = vmatprep.subr.bf16.mxu0 0
        %1294 = vmatpush1.bf16.msra.mxu0 0
        %1295 = vmatprep.subr.bf16.mxu0 0
        %1296 = vmatpush1.bf16.msra.mxu0 0
        %1297 = vmatprep.subr.bf16.mxu0 0
        %1298 = vmatpush1.bf16.msra.mxu0 0
        %1299 = vmatprep.subr.bf16.mxu0 0
        %1300 = vmatpush1.bf16.msra.mxu0 0
        %1301 = vmatprep.subr.bf16.mxu0 0
        %1302 = vmatpush1.bf16.msra.mxu0 0
        %1303 = vmatprep.subr.bf16.mxu0 0
        %1304 = vmatpush1.bf16.msra.mxu0 %v1285
        %1305 = vmatprep.subr.bf16.mxu0 0
        %1306 = vmatpush1.bf16.msra.mxu0 %v1284
        %1307 = vmatprep.subr.bf16.mxu0 0
        %1308 = vmatpush2.bf16.msra.mxu0 0
        %1309 = vmatprep.subr.bf16.mxu0 0
        %1310 = vmatpush2.bf16.msra.mxu0 0
        %1311 = vmatprep.subr.bf16.mxu0 0
        %1312 = vmatpush2.bf16.msra.mxu0 0
        %1313 = vmatprep.subr.bf16.mxu0 0
        %1314 = vmatpush2.bf16.msra.mxu0 0
        %1315 = vmatprep.subr.bf16.mxu0 0
        %1316 = vmatpush2.bf16.msra.mxu0 0
        %1317 = vmatprep.subr.bf16.mxu0 0
        %1318 = vmatpush2.bf16.msra.mxu0 0
        %1319 = vmatprep.subr.bf16.mxu0 0
        %1320 = vmatpush2.bf16.msra.mxu0 0
        %1321 = vmatprep.subr.bf16.mxu0 0
        %1322 = vmatpush2.bf16.msra.mxu0 0
        %1323 = vmatprep.mubr.bf16.mxu0 0
        %1324 = vmatmul.mubr.bf16.gmra.mxu0 %v1289
        %v1325 = vpop.f32.mrf.mxu0
        %v1326 = vadd.f32 %v1274, %v1325
        %v1327 = vpop.f32.mrf.mxu0
        %v1328 = vpop.f32.mrf.mxu0
        %v1329 = vpop.f32.mrf.mxu0
        %1330 = vdwg.mxu0
        %1331 = vst.msk [vmem:[%s586] sm:$0xff] %vm626, %v1326
        %s1332 = sand.u32 %s308, 1
        %s1333 = scalar_lea.sflag [#allocation4], %s1332
        %s1334 = sand.u32 %s308, 1
        %s1335 = smul.addr %s1334, 8
        %s1336 = scalar_lea.vmem [#allocation14], %s1335
        %s1337 = sand.u32 %s336, 1
        %s1338 = scalar_lea.sflag [#allocation16], %s1337
        %s1339 = sand.u32 %s336, 1
        %s1340 = smul.addr %s1339, 32
        %s1341 = scalar_lea.vmem [#allocation15], %s1340
        // Predicated region
        $region93: #{tpu_custom_call.1} parent=63 // pred_check
          %p1342 = pneg %p318
        $region94: #{tpu_custom_call.1} parent=63 // pred_check_branch
          %1344 = sbr.rel (%p1342) target = $region96
        $region95: #{tpu_custom_call.1} parent=63 // pred_region
          %s1346 = ssub.s32 128, 128
          %1347 = vsyncadd %s1333, %s1346
          %s1348 = sadd.s32 %s43, %s42
          %s1349 = smul.addr %s1348, 128
          %s1350 = scalar_lea.hbm %s11, %s1349
          %s1352 = sshll.u32 %s1336, 4
          %s1353 = int_to_ptr.vmem [resolvable:$true] %s1352
          %1355 = dma.vmem_to_hbm [thread:$0]  %s1353, 128, %s1350, %s1333
        $region96: #{tpu_custom_call.1} parent=63 // pred_fallthru
          _
        // Predicated region
        $region97: #{tpu_custom_call.1} parent=63 // pred_check
          %p1356 = pneg %p346
        $region98: #{tpu_custom_call.1} parent=63 // pred_check_branch
          %1358 = sbr.rel (%p1356) target = $region100
        $region99: #{tpu_custom_call.1} parent=63 // pred_region
          %s1360 = ssub.s32 512, 512
          %1361 = vsyncadd %s1338, %s1360
          %s1362 = smul.addr %s42, 4
          %s1363 = sadd.s32 %s43, %s1362
          %s1364 = smul.addr %s1363, 128
          %s1365 = scalar_lea.hbm %s12, %s1364
          %s1366 = sshll.u32 %s1341, 4
          %s1367 = int_to_ptr.vmem [resolvable:$true] %s1366
          %1372 = dma.vmem_to_hbm [thread:$0]  %s1367, 512, %s1365, %s1338, 128, 128, 8
        $region100: #{tpu_custom_call.1} parent=63 // pred_fallthru
          _
      $region64: #{tpu_custom_call.1} parent=5 // pred_fallthru
        _
      %p1373 = scmp.le.s32.totalorder 2, %s33
      // Predicated region
      $region101: #{tpu_custom_call.1} parent=5 // pred_check
        %p1374 = pneg %p1373
      $region102: #{tpu_custom_call.1} parent=5 // pred_check_branch
        %1376 = sbr.rel (%p1374) target = $region104
      $region103: #{tpu_custom_call.1} parent=5 // pred_region
        %s1377 = ssub.s32 %s33, 2
        // Predicated region
        $region105: #{tpu_custom_call.1} parent=103 // pred_check
          %p1378 = pneg %p324
        $region106: #{tpu_custom_call.1} parent=103 // pred_check_branch
          %1380 = sbr.rel (%p1378) target = $region108
        $region107: #{tpu_custom_call.1} parent=103 // pred_region
          %s1381 = sand.u32 %s309, 1
          %s1382 = scalar_lea.sflag [#allocation4], %s1381
          %s1383 = sand.u32 %s309, 1
          %s1384 = smul.addr %s1383, 8
          %s1385 = scalar_lea.vmem [#allocation14], %s1384
          %1386 = dma.done %s1382, 128
        $region108: #{tpu_custom_call.1} parent=103 // pred_fallthru
          _
        // Predicated region
        $region109: #{tpu_custom_call.1} parent=103 // pred_check
          %p1387 = pneg %p352
        $region110: #{tpu_custom_call.1} parent=103 // pred_check_branch
          %1389 = sbr.rel (%p1387) target = $region112
        $region111: #{tpu_custom_call.1} parent=103 // pred_region
          %s1390 = sand.u32 %s337, 1
          %s1391 = scalar_lea.sflag [#allocation16], %s1390
          %s1392 = sand.u32 %s337, 1
          %s1393 = smul.addr %s1392, 32
          %s1394 = scalar_lea.vmem [#allocation15], %s1393
          %1395 = dma.done %s1391, 512
        $region112: #{tpu_custom_call.1} parent=103 // pred_fallthru
          _
      $region104: #{tpu_custom_call.1} parent=5 // pred_fallthru
        _
    $region6: #{tpu_custom_call.1} parent=1 // loop_footer
      %s37 = sadd.s32 1, %s33
    $region7: #{tpu_custom_call.1} parent=1 // loop_footer_branch
      %32 = sbr.rel target = $region3
    $region8: #{tpu_custom_call.1} parent=1 // loop_exit
      _
    %1396 = vsyncpa [#allocation3], 1
    %s1397 = scalar_lea.sflag [#allocation3], 1
    %1398 = vsyncpa %s1397, 1
    %1399 = vsyncpa [#allocation6], 1
    %s1400 = scalar_lea.sflag [#allocation6], 1
    %1401 = vsyncpa %s1400, 1
    %1402 = vsyncpa [#allocation9], 1
    %1403 = vsyncpa [#allocation12], 1
    %1404 = vsyncpa [#allocation4], 1
    %s1405 = scalar_lea.sflag [#allocation4], 1
    %1406 = vsyncpa %s1405, 1
    %1407 = vsyncpa [#allocation16], 1
    %s1408 = scalar_lea.sflag [#allocation16], 1
    %1409 = vsyncpa %s1408, 1

</llo_original>
